<compile_context>
chip_gen: v5e
topology: v5e:2x2
jax: 0.10.0
libtpu: 0.0.40
codegen_flags: <defaults>
</compile_context>

<pallas_src>
import jax
import jax.numpy as jnp
from jax.experimental import pallas as pl
from jax.experimental.pallas import tpu as pltpu


def _round_up(x, m):
    return -(-x // m) * m


# --------------------------------------------------------------------------- kernel
def _vgg_relu1_2_kernel(pt_ref, w1_ref, b1_ref, w2_ref, b2_ref, o_ref, y1p_ref):
    """Fused conv1_1 + ReLU + conv1_2 + ReLU for one (batch, row-tile) block.

    Block shapes:
      pt_ref : (1, 1, (TH+2)*Wp2, 27)  conv1_1 im2col patches (tile + 1-row halo),
                                       pre-flattened; Wp2 = round_up(W+2, 8)
      w1_ref : (27, C1)                conv1_1 weights, K ordered (kh, kw, cin)
      b1_ref : (1, C1)
      w2_ref : (3*C1, 3*C2)            conv1_2 weights, K=(kw,cin), N = 3 kh slabs
      b2_ref : (1, 1, C2)
      o_ref  : (1, TH, W, C2)          output row tile
      y1p_ref: (TH+2, Wr, 3*C1)        kw-packed relu1_1 (+halo rows)   [VMEM scratch]
    """
    _, TH, W, C2 = o_ref.shape
    THp2 = TH + 2
    C1 = b1_ref.shape[1]
    M1 = pt_ref.shape[2]
    Wp2 = M1 // THp2
    Wr = y1p_ref.shape[1]

    # ---- conv1_1 + bias + ReLU: one K=27 im2col matmul (LHS already 2-D, no relayout).
    y1 = jnp.dot(pt_ref[0, 0], w1_ref[...], preferred_element_type=jnp.float32)
    y1 = jnp.maximum(y1 + b1_ref[...], 0.0)
    # Sublane-aligned split (Wp2 % 8 == 0, f32 value) -> free.
    y1 = y1.reshape(THp2, Wp2, C1).astype(y1p_ref.dtype)

    # ---- kw-pack relu1_1 straight into the scratch: y1p[r, c, kw*C1+ci] = y1[r, c+kw, ci].
    for kw in range(3):                                           # three 64-lane slice stores
        y1p_ref[:, 0:W, kw * C1:(kw + 1) * C1] = y1[:, kw:kw + W, :]

    # ---- conv1_2 "SAME" padding: relu1_1 ring positions outside the image are exactly 0.
    zcol = jnp.zeros((THp2, 1, C1), y1p_ref.dtype)
    y1p_ref[:, 0:1, 0:C1] = zcol                                  # image column -1 (kw=0, c=0)
    y1p_ref[:, W - 1:W, 2 * C1:3 * C1] = zcol                     # image column W  (kw=2, c=W-1)

    zrow = jnp.zeros((1, Wr, 3 * C1), y1p_ref.dtype)
    h = pl.program_id(1)

    @pl.when(h == 0)
    def _():
        y1p_ref[0:1] = zrow                                       # image row -1

    @pl.when(h == pl.num_programs(1) - 1)
    def _():
        y1p_ref[THp2 - 1:THp2] = zrow                             # image row H

    # ---- conv1_2 + ReLU as ONE widened matmul: K = 3*C1 = 192, N = 3*C2 = 192.
    lhs2 = y1p_ref[...].reshape(THp2 * Wr, 3 * C1)                # tile-aligned merge (free)
    r = jnp.dot(lhs2, w2_ref[...], preferred_element_type=jnp.float32)
    r = r.reshape(THp2, Wr, 3 * C2)

    out = (r[0:TH, 0:W, 0:C2]
           + r[1:TH + 1, 0:W, C2:2 * C2]
           + r[2:TH + 2, 0:W, 2 * C2:3 * C2])
    o_ref[0] = jnp.maximum(out + b2_ref[...], 0.0).astype(o_ref.dtype)


# ------------------------------------------------------------------- tiling heuristics
def _vmem_capacity_bytes():
    try:
        info = pltpu.get_tpu_info()
        for attr in ("vmem_capacity_bytes", "vmem_bytes", "vmem_size_bytes"):
            cap = getattr(info, attr, None)
            if cap:
                return int(cap)
    except Exception:
        pass
    return 64 * 1024 * 1024      # conservative fallback: assume v7x-sized per-TC VMEM


def _tile_vmem_bytes(TH, W, mxu_esize, out_esize):
    """Lane-padding-aware VMEM estimate for one grid step (incl. double buffers)."""
    THp2 = TH + 2
    Wp2 = _round_up(W + 2, 8)
    Wr = _round_up(W, 8 * (4 // mxu_esize))
    pt_blk = 2 * THp2 * Wp2 * 128 * mxu_esize      # 27-wide block pads to 128 lanes
    out_blk = 2 * TH * W * 128 * out_esize         # 64-wide output pads to 128 lanes
    y1p_scr = THp2 * Wr * 256 * mxu_esize          # 192-wide scratch pads to 256 lanes
    y1_val = THp2 * Wp2 * 128 * 4                  # f32 conv1_1 result value
    r_val = THp2 * Wr * 256 * 4                    # f32 widened conv1_2 result value
    return pt_blk + out_blk + y1p_scr + y1_val + r_val + (256 << 10)


def _pick_tile_h(H, W, N, budget_bytes, mxu_esize, out_esize):
    divisors = [d for d in range(H, 0, -1) if H % d == 0]
    fit = [d for d in divisors
           if _tile_vmem_bytes(d, W, mxu_esize, out_esize) <= budget_bytes]
    if not fit:
        return 1                                   # tiny tiles; still correct
    th = fit[0]                                    # biggest tile that fits the budget
    if N * (H // th) < 2:                          # keep both v7x TensorCores busy
        for d in fit:
            if H // d >= 2:
                th = d
                break
    return th


# ---------------------------------------------------------------------------- wrapper
def vgg_relu1_2(x_nhwc, w1, b1, w2, b2, *, tile_h=None,
                mxu_dtype=jnp.bfloat16, out_dtype=jnp.float32):
    """relu(conv1_2(relu(conv1_1(x)))); 3x3/s1/p1 convs; NHWC in, NHWC out."""
    N, H, W, Cin = x_nhwc.shape
    C1 = w1.shape[3]
    C2 = w2.shape[3]
    mxu_esize = jnp.dtype(mxu_dtype).itemsize
    out_esize = jnp.dtype(out_dtype).itemsize

    cap = _vmem_capacity_bytes()
    vmem_limit = int(max(32 << 20, min(int(cap * 0.60), 96 << 20)))
    budget = int(vmem_limit * 0.80)

    TH = tile_h if (tile_h is not None and H % tile_h == 0) else None
    if TH is None:
        TH = _pick_tile_h(H, W, N, budget, mxu_esize, out_esize)
    nH = H // TH
    Wp2 = _round_up(W + 2, 8)
    Wr = _round_up(W, 8 * (4 // mxu_esize))

    # Wrapper-side im2col (K = 9*Cin = 27).  Cast to the MXU dtype FIRST so every
    # subsequent pad/concat/gather pass moves half the bytes.  Patch grid covers
    # conv1_1 outputs at rows -1..H and cols -1..Wp2-2 (cols >= W+1 are junk and
    # never read by the kernel's kw-pack step).
    x_m = x_nhwc.astype(mxu_dtype)
    xp = jnp.pad(x_m, ((0, 0), (2, 2), (2, 2 + (Wp2 - (W + 2))), (0, 0)))
    patches = jnp.concatenate(
        [xp[:, kh:kh + H + 2, kw:kw + Wp2, :] for kh in range(3) for kw in range(3)],
        axis=-1)                                                  # (N, H+2, Wp2, 27)
    # Overlapping row tiles (1-row halo each side) as a single gather, pre-flattened
    # so the kernel's conv1_1 LHS needs no in-kernel relayout.
    row_idx = jnp.arange(nH)[:, None] * TH + jnp.arange(TH + 2)[None, :]   # (nH, TH+2)
    pt = patches[:, row_idx].reshape(N, nH, (TH + 2) * Wp2, 9 * Cin)

    w1f = w1.reshape(9 * Cin, C1).astype(mxu_dtype)               # K order (kh, kw, cin)
    w2w = jnp.concatenate([w2[kh].reshape(3 * C1, C2) for kh in range(3)],
                          axis=1).astype(mxu_dtype)               # (3*C1, 3*C2), N = kh slabs
    b1r = b1.reshape(1, C1).astype(jnp.float32)
    b2r = b2.reshape(1, 1, C2).astype(jnp.float32)

    return pl.pallas_call(
        _vgg_relu1_2_kernel,
        out_shape=jax.ShapeDtypeStruct((N, H, W, C2), out_dtype),
        grid=(N, nH),
        in_specs=[
            pl.BlockSpec((1, 1, (TH + 2) * Wp2, 9 * Cin), lambda n, h: (n, h, 0, 0)),
            pl.BlockSpec((9 * Cin, C1), lambda n, h: (0, 0)),
            pl.BlockSpec((1, C1), lambda n, h: (0, 0)),
            pl.BlockSpec((3 * C1, 3 * C2), lambda n, h: (0, 0)),
            pl.BlockSpec((1, 1, C2), lambda n, h: (0, 0, 0)),
        ],
        out_specs=pl.BlockSpec((1, TH, W, C2), lambda n, h: (n, h, 0, 0)),
        scratch_shapes=[
            pltpu.VMEM((TH + 2, Wr, 3 * C1), mxu_dtype),   # kw-packed relu1_1 tile
        ],
        compiler_params=pltpu.CompilerParams(
            dimension_semantics=("parallel", "parallel"),   # megacore / v7x sharding
            vmem_limit_bytes=vmem_limit,
        ),
    )(pt, w1f, b1r, w2w, b2r)


# ------------------------------------------------------------------- module interface
def make_params(key):
    """Deterministic synthetic VGG16 conv1_1 / conv1_2 parameters (HWIO)."""
    k1, k2, k3, k4 = jax.random.split(key, 4)
    w1 = jax.random.normal(k1, (3, 3, 3, 64), jnp.float32) * (2.0 / (3 * 3 * 3)) ** 0.5
    b1 = jax.random.normal(k2, (64,), jnp.float32) * 0.01
    w2 = jax.random.normal(k3, (3, 3, 64, 64), jnp.float32) * (2.0 / (3 * 3 * 64)) ** 0.5
    b2 = jax.random.normal(k4, (64,), jnp.float32) * 0.01
    return (w1, b1), (w2, b2)


def loss_network_forward(x_nchw, params, *, tile_h=None,
                         mxu_dtype=jnp.bfloat16, out_dtype=jnp.float32):
    """LossNetwork.forward: returns the relu1_2 activation. NCHW in, NCHW out."""
    (w1, b1), (w2, b2) = params
    # TODO(synk): keep the surrounding model NHWC end-to-end; these transposes exist
    # only to match the PyTorch NCHW interface and each costs an HBM pass.
    x = jnp.transpose(x_nchw, (0, 2, 3, 1))
    y = vgg_relu1_2(x, w1, b1, w2, b2, tile_h=tile_h,
                    mxu_dtype=mxu_dtype, out_dtype=out_dtype)
    return jnp.transpose(y, (0, 3, 1, 2))


def _reference_forward(x_nchw, params):
    """Pure-JAX reference (lax conv) for the correctness check."""
    (w1, b1), (w2, b2) = params
    dn1 = jax.lax.conv_dimension_numbers(x_nchw.shape, w1.shape,
                                         ("NCHW", "HWIO", "NCHW"))
    h = jax.lax.conv_general_dilated(x_nchw, w1, (1, 1), "SAME",
                                     dimension_numbers=dn1,
                                     precision=jax.lax.Precision.HIGHEST)
    h = jax.nn.relu(h + b1[None, :, None, None])
    dn2 = jax.lax.conv_dimension_numbers(h.shape, w2.shape,
                                         ("NCHW", "HWIO", "NCHW"))
    h = jax.lax.conv_general_dilated(h, w2, (1, 1), "SAME",
                                     dimension_numbers=dn2,
                                     precision=jax.lax.Precision.HIGHEST)
    return jax.nn.relu(h + b2[None, :, None, None])


if __name__ == "__main__":
    key = jax.random.PRNGKey(0)
    kx, kp = jax.random.split(key)

    # Small input consistent with VGG's 3-channel NCHW interface.
    x = jax.random.normal(kx, (2, 3, 16, 16), jnp.float32)
    params = make_params(kp)

    ref = jax.block_until_ready(_reference_forward(x, params))

    # Exact-path check (f32 MXU).
    out_f32 = jax.block_until_ready(
        jax.jit(lambda inp: loss_network_forward(inp, params,
                                                 mxu_dtype=jnp.float32))(x))
    assert out_f32.shape == (2, 64, 16, 16), out_f32.shape
    err_f32 = float(jnp.max(jnp.abs(out_f32 - ref)))
    assert jnp.allclose(out_f32, ref, atol=2e-4, rtol=2e-4), err_f32

    # Default fast path (bf16 MXU inputs, f32 accumulation) — looser tolerance.
    out_bf16 = jax.block_until_ready(
        jax.jit(lambda inp: loss_network_forward(inp, params))(x))
    assert out_bf16.shape == (2, 64, 16, 16), out_bf16.shape
    rel = float(jnp.max(jnp.abs(out_bf16 - ref)) / (jnp.max(jnp.abs(ref)) + 1e-6))
    assert rel < 8e-2, rel

    print("KERNEL_OK")
</pallas_src>

<mosaic_0001>
module attributes {stable_mosaic.version = 11 : i64} {
  func.func @_vgg_relu1_2_kernel(%arg0: i32, %arg1: i32, %arg2: memref<1x1x432x27xf32, #tpu.memory_space<vmem>>, %arg3: memref<27x64xf32, #tpu.memory_space<vmem>>, %arg4: memref<1x64xf32, #tpu.memory_space<vmem>>, %arg5: memref<192x192xf32, #tpu.memory_space<vmem>>, %arg6: memref<1x1x64xf32, #tpu.memory_space<vmem>>, %arg7: memref<1x16x16x64xf32, #tpu.memory_space<vmem>>, %arg8: memref<18x16x192xf32, #tpu.memory_space<vmem>>) attributes {dimension_semantics = [#tpu.dimension_semantics<parallel>, #tpu.dimension_semantics<parallel>], iteration_bounds = array<i64: 2, 1>, scalar_prefetch = 0 : i64, scratch_operands = 1 : i64, tpu.core_type = #tpu.core_type<tc>, window_params = [{transform_indices = @transform_0, window_bounds = array<i64: 1, 1, 432, 27>}, {pipeline_mode = #tpu.pipeline_mode<synchronous>, transform_indices = @transform_1, window_bounds = array<i64: 27, 64>}, {pipeline_mode = #tpu.pipeline_mode<synchronous>, transform_indices = @transform_2, window_bounds = array<i64: 1, 64>}, {pipeline_mode = #tpu.pipeline_mode<synchronous>, transform_indices = @transform_3, window_bounds = array<i64: 192, 192>}, {pipeline_mode = #tpu.pipeline_mode<synchronous>, transform_indices = @transform_4, window_bounds = array<i64: 1, 1, 64>}, {transform_indices = @transform_5, window_bounds = array<i64: 1, 16, 16, 64>}]} {
    %c0 = arith.constant 0 : index
    %c0_0 = arith.constant 0 : index
    %c0_1 = arith.constant 0 : index
    %c0_2 = arith.constant 0 : index
    %0 = vector.load %arg2[%c0, %c0_0, %c0_1, %c0_2] : memref<1x1x432x27xf32, #tpu.memory_space<vmem>>, vector<1x1x432x27xf32>
    %1 = vector.shape_cast %0 : vector<1x1x432x27xf32> to vector<432x27xf32>
    %c0_3 = arith.constant 0 : index
    %c0_4 = arith.constant 0 : index
    %2 = vector.load %arg3[%c0_3, %c0_4] : memref<27x64xf32, #tpu.memory_space<vmem>>, vector<27x64xf32>
    %cst = arith.constant dense<0.000000e+00> : vector<432x64xf32>
    %3 = tpu.matmul %1, %2, %cst {dimension_numbers = #tpu.dot_dimension_numbers<[1], [0], [0], [1], [0, 0, 1, 1], [], []>} : vector<432x27xf32>, vector<27x64xf32>, vector<432x64xf32> -> vector<432x64xf32>
    %c0_5 = arith.constant 0 : index
    %c0_6 = arith.constant 0 : index
    %4 = vector.load %arg4[%c0_5, %c0_6] : memref<1x64xf32, #tpu.memory_space<vmem>>, vector<1x64xf32>
    %5 = vector.broadcast %4 : vector<1x64xf32> to vector<432x64xf32>
    %6 = arith.addf %3, %5 : vector<432x64xf32>
    %cst_7 = arith.constant 0.000000e+00 : f32
    %7 = vector.broadcast %cst_7 : f32 to vector<432x64xf32>
    %8 = arith.maximumf %6, %7 : vector<432x64xf32>
    %9 = vector.shape_cast %8 : vector<432x64xf32> to vector<18x24x64xf32>
    %10 = vector.extract_strided_slice %9 {offsets = [0, 0, 0], sizes = [18, 16, 64], strides = [1, 1, 1]} : vector<18x24x64xf32> to vector<18x16x64xf32>
    %c0_8 = arith.constant 0 : index
    %c0_9 = arith.constant 0 : index
    %c0_10 = arith.constant 0 : index
    %11 = vector.load %arg8[%c0_8, %c0_9, %c0_10] : memref<18x16x192xf32, #tpu.memory_space<vmem>>, vector<18x16x64xf32>
    tpu.vector_store %arg8[%c0_8, %c0_9, %c0_10], %10 {strides = array<i32>} : memref<18x16x192xf32, #tpu.memory_space<vmem>>, vector<18x16x64xf32>,
    %12 = vector.extract_strided_slice %9 {offsets = [0, 1, 0], sizes = [18, 16, 64], strides = [1, 1, 1]} : vector<18x24x64xf32> to vector<18x16x64xf32>
    %c0_11 = arith.constant 0 : index
    %c0_12 = arith.constant 0 : index
    %c64 = arith.constant 64 : index
    %13 = vector.load %arg8[%c0_11, %c0_12, %c64] : memref<18x16x192xf32, #tpu.memory_space<vmem>>, vector<18x16x64xf32>
    tpu.vector_store %arg8[%c0_11, %c0_12, %c64], %12 {strides = array<i32>} : memref<18x16x192xf32, #tpu.memory_space<vmem>>, vector<18x16x64xf32>,
    %14 = vector.extract_strided_slice %9 {offsets = [0, 2, 0], sizes = [18, 16, 64], strides = [1, 1, 1]} : vector<18x24x64xf32> to vector<18x16x64xf32>
    %c0_13 = arith.constant 0 : index
    %c0_14 = arith.constant 0 : index
    %c128 = arith.constant 128 : index
    %15 = vector.load %arg8[%c0_13, %c0_14, %c128] : memref<18x16x192xf32, #tpu.memory_space<vmem>>, vector<18x16x64xf32>
    tpu.vector_store %arg8[%c0_13, %c0_14, %c128], %14 {strides = array<i32>} : memref<18x16x192xf32, #tpu.memory_space<vmem>>, vector<18x16x64xf32>,
    %cst_15 = arith.constant 0.000000e+00 : f32
    %16 = vector.broadcast %cst_15 : f32 to vector<18x1x64xf32>
    %c0_16 = arith.constant 0 : index
    %c0_17 = arith.constant 0 : index
    %c0_18 = arith.constant 0 : index
    %17 = vector.load %arg8[%c0_16, %c0_17, %c0_18] : memref<18x16x192xf32, #tpu.memory_space<vmem>>, vector<18x1x64xf32>
    tpu.vector_store %arg8[%c0_16, %c0_17, %c0_18], %16 {strides = array<i32>} : memref<18x16x192xf32, #tpu.memory_space<vmem>>, vector<18x1x64xf32>,
    %c0_19 = arith.constant 0 : index
    %c15 = arith.constant 15 : index
    %c128_20 = arith.constant 128 : index
    %18 = vector.load %arg8[%c0_19, %c15, %c128_20] : memref<18x16x192xf32, #tpu.memory_space<vmem>>, vector<18x1x64xf32>
    tpu.vector_store %arg8[%c0_19, %c15, %c128_20], %16 {strides = array<i32>} : memref<18x16x192xf32, #tpu.memory_space<vmem>>, vector<18x1x64xf32>,
    %cst_21 = arith.constant 0.000000e+00 : f32
    %19 = vector.broadcast %cst_21 : f32 to vector<1x16x192xf32>
    %c0_i32 = arith.constant 0 : i32
    %20 = arith.cmpi eq, %arg1, %c0_i32 : i32
    %21 = arith.extui %20 : i1 to i32
    %c0_i32_22 = arith.constant 0 : i32
    %22 = arith.cmpi ne, %21, %c0_i32_22 : i32
    scf.if %22 {
      %c0_39 = arith.constant 0 : index
      %c0_40 = arith.constant 0 : index
      %c0_41 = arith.constant 0 : index
      %44 = vector.load %arg8[%c0_39, %c0_40, %c0_41] : memref<18x16x192xf32, #tpu.memory_space<vmem>>, vector<1x16x192xf32>
      tpu.vector_store %arg8[%c0_39, %c0_40, %c0_41], %19 {strides = array<i32>} : memref<18x16x192xf32, #tpu.memory_space<vmem>>, vector<1x16x192xf32>,
    } else {
    }
    %c0_i32_23 = arith.constant 0 : i32
    %23 = arith.cmpi eq, %arg1, %c0_i32_23 : i32
    %24 = arith.extui %23 : i1 to i32
    %c0_i32_24 = arith.constant 0 : i32
    %25 = arith.cmpi ne, %24, %c0_i32_24 : i32
    scf.if %25 {
      %c17 = arith.constant 17 : index
      %c0_39 = arith.constant 0 : index
      %c0_40 = arith.constant 0 : index
      %44 = vector.load %arg8[%c17, %c0_39, %c0_40] : memref<18x16x192xf32, #tpu.memory_space<vmem>>, vector<1x16x192xf32>
      tpu.vector_store %arg8[%c17, %c0_39, %c0_40], %19 {strides = array<i32>} : memref<18x16x192xf32, #tpu.memory_space<vmem>>, vector<1x16x192xf32>,
    } else {
    }
    %c0_25 = arith.constant 0 : index
    %c0_26 = arith.constant 0 : index
    %c0_27 = arith.constant 0 : index
    %26 = vector.load %arg8[%c0_25, %c0_26, %c0_27] : memref<18x16x192xf32, #tpu.memory_space<vmem>>, vector<18x16x192xf32>
    %27 = vector.shape_cast %26 : vector<18x16x192xf32> to vector<288x192xf32>
    %c0_28 = arith.constant 0 : index
    %c0_29 = arith.constant 0 : index
    %28 = vector.load %arg5[%c0_28, %c0_29] : memref<192x192xf32, #tpu.memory_space<vmem>>, vector<192x192xf32>
    %cst_30 = arith.constant dense<0.000000e+00> : vector<288x192xf32>
    %29 = tpu.matmul %27, %28, %cst_30 {dimension_numbers = #tpu.dot_dimension_numbers<[1], [0], [0], [1], [0, 0, 1, 1], [], []>} : vector<288x192xf32>, vector<192x192xf32>, vector<288x192xf32> -> vector<288x192xf32>
    %30 = vector.shape_cast %29 : vector<288x192xf32> to vector<18x16x192xf32>
    %31 = vector.extract_strided_slice %30 {offsets = [0, 0, 0], sizes = [16, 16, 64], strides = [1, 1, 1]} : vector<18x16x192xf32> to vector<16x16x64xf32>
    %32 = vector.extract_strided_slice %30 {offsets = [1, 0, 64], sizes = [16, 16, 64], strides = [1, 1, 1]} : vector<18x16x192xf32> to vector<16x16x64xf32>
    %33 = arith.addf %31, %32 : vector<16x16x64xf32>
    %34 = vector.extract_strided_slice %30 {offsets = [2, 0, 128], sizes = [16, 16, 64], strides = [1, 1, 1]} : vector<18x16x192xf32> to vector<16x16x64xf32>
    %35 = arith.addf %33, %34 : vector<16x16x64xf32>
    %c0_31 = arith.constant 0 : index
    %c0_32 = arith.constant 0 : index
    %c0_33 = arith.constant 0 : index
    %36 = vector.load %arg6[%c0_31, %c0_32, %c0_33] : memref<1x1x64xf32, #tpu.memory_space<vmem>>, vector<1x1x64xf32>
    %37 = vector.broadcast %36 : vector<1x1x64xf32> to vector<16x16x64xf32>
    %38 = arith.addf %35, %37 : vector<16x16x64xf32>
    %cst_34 = arith.constant 0.000000e+00 : f32
    %39 = vector.broadcast %cst_34 : f32 to vector<16x16x64xf32>
    %40 = arith.maximumf %38, %39 : vector<16x16x64xf32>
    %c0_35 = arith.constant 0 : index
    %c0_36 = arith.constant 0 : index
    %c0_37 = arith.constant 0 : index
    %c0_38 = arith.constant 0 : index
    %41 = vector.load %arg7[%c0_35, %c0_36, %c0_37, %c0_38] : memref<1x16x16x64xf32, #tpu.memory_space<vmem>>, vector<1x16x16x64xf32>
    %42 = vector.shape_cast %41 : vector<1x16x16x64xf32> to vector<16x16x64xf32>
    %43 = vector.shape_cast %40 : vector<16x16x64xf32> to vector<1x16x16x64xf32>
    tpu.vector_store %arg7[%c0_35, %c0_36, %c0_37, %c0_38], %43 {strides = array<i32>} : memref<1x16x16x64xf32, #tpu.memory_space<vmem>>, vector<1x16x16x64xf32>,
    return
  }
  func.func @transform_0(%arg0: i32, %arg1: i32) -> (i32, i32, i32, i32) {
    %c0_i32 = arith.constant 0 : i32
    %c0_i32_0 = arith.constant 0 : i32
    %c0_i32_1 = arith.constant 0 : i32
    return %arg0, %arg1, %c0_i32, %c0_i32_0 : i32, i32, i32, i32
  }
  func.func @transform_1(%arg0: i32, %arg1: i32) -> (i32, i32) {
    %c0_i32 = arith.constant 0 : i32
    %c0_i32_0 = arith.constant 0 : i32
    %c0_i32_1 = arith.constant 0 : i32
    return %c0_i32, %c0_i32_0 : i32, i32
  }
  func.func @transform_2(%arg0: i32, %arg1: i32) -> (i32, i32) {
    %c0_i32 = arith.constant 0 : i32
    %c0_i32_0 = arith.constant 0 : i32
    %c0_i32_1 = arith.constant 0 : i32
    return %c0_i32, %c0_i32_0 : i32, i32
  }
  func.func @transform_3(%arg0: i32, %arg1: i32) -> (i32, i32) {
    %c0_i32 = arith.constant 0 : i32
    %c0_i32_0 = arith.constant 0 : i32
    %c0_i32_1 = arith.constant 0 : i32
    return %c0_i32, %c0_i32_0 : i32, i32
  }
  func.func @transform_4(%arg0: i32, %arg1: i32) -> (i32, i32, i32) {
    %c0_i32 = arith.constant 0 : i32
    %c0_i32_0 = arith.constant 0 : i32
    %c0_i32_1 = arith.constant 0 : i32
    %c0_i32_2 = arith.constant 0 : i32
    return %c0_i32, %c0_i32_0, %c0_i32_1 : i32, i32, i32
  }
  func.func @transform_5(%arg0: i32, %arg1: i32) -> (i32, i32, i32, i32) {
    %c0_i32 = arith.constant 0 : i32
    %c0_i32_0 = arith.constant 0 : i32
    %c0_i32_1 = arith.constant 0 : i32
    return %arg0, %arg1, %c0_i32, %c0_i32_0 : i32, i32, i32, i32
  }
}

</mosaic_0001>

<llo_original>
// kernel: _lambda_.1
$region0: #{_lambda_.1}
  #allocation0 [shape = 'u32[]', space=smem, size = 0x4, offset = 0x4, fixed_abs, tag = 'smem constant byte address 0x4 - core index']
  #allocation1 [shape = 'u32[72,128]{1,0:T(1,128)}', space=vmem, size = 0x9000, scoped, tag = 'internal scratch']
  #allocation2 [shape = 'f32[18,16,192]{2,1,0:T(8,128)}', space=vmem, size = 0x48000, scoped, tag = 'scratch operand']
  %s0 = inlined_call_operand.vmem [shape: f32[2,1,432,27], index: 0, kind: input, shape index: {}]
  %s1 = inlined_call_operand.vmem [shape: f32[27,64], index: 1, kind: input, shape index: {}]
  %s2 = inlined_call_operand.vmem [shape: f32[1,64], index: 2, kind: input, shape index: {}]
  %s3 = inlined_call_operand.vmem [shape: f32[192,192], index: 3, kind: input, shape index: {}]
  %s4 = inlined_call_operand.vmem [shape: f32[1,1,64], index: 4, kind: input, shape index: {}]
  %s5 = inlined_call_operand.hbm [shape: f32[2,16,16,64], index: 5, kind: output, shape index: {}]
  %s6 = sld [smem:[#allocation0]]
  $region57: #{_lambda_.1} parent=0
    _
  %s8 = ssub.s32 1, %s6
  %s9 = scalar_select 0, %s8, %s6
  $region1: #{_lambda_.1} parent=0
    #allocation3 [shape = 'u8[262144]{0}', space=vmem, size = 0x40000, scoped, tag = 'output window, operand 0']
    #allocation4 [shape = 's32[2]{0}', space=sflag, size = 0x8, scoped, tag = 'scoped memory for _lambda_.1']
    %10 = vsyncpa [#allocation4], 0
    %s11 = scalar_lea.sflag [#allocation4], 1
    %12 = vsyncpa %s11, 0
    loop: start=0, step=1, limit=4
    $region2: #{_lambda_.1} parent=1 // loop_pre_header
      _
    $region3: #{_lambda_.1} parent=1 // loop_header
      %s14 = sphi 0, %s18
      %p15 = scmp.ge.s32.totalorder %s14, 4
      %s21 = sphi 0, %s33
      %s22 = sphi 0, %s29
      %s23 = sphi 0, %s21
      %s24 = sphi 0, %s22
      %s25 = sphi 0, %s23
      %s26 = sphi 0, %s24
      %s38 = sphi 0, %s40
      %s41 = sphi 0, %s38
      %s42 = sphi 0, %s41
      %s58 = sphi 0, %s42
      %s62 = sphi 0, %s62
      %s64 = sphi 0, %s62
      %s65 = sphi 0, %s64
      %s79 = sphi 0, %s65
      %s83 = sphi 0, %s83
      %s85 = sphi 0, %s83
      %s86 = sphi 0, %s85
      %s100 = sphi 0, %s86
      %s104 = sphi 0, %s104
      %s106 = sphi 0, %s104
      %s107 = sphi 0, %s106
      %s121 = sphi 0, %s107
      %s125 = sphi 0, %s125
      %s127 = sphi 0, %s125
      %s128 = sphi 0, %s127
      %s142 = sphi 0, %s128
      %s150 = sphi 0, %s152
      %s153 = sphi 0, %s150
      %s154 = sphi 0, %s153
      %s170 = sphi 0, %s154
    $region4: #{_lambda_.1} parent=1 // loop_header_branch
      %17 = sbr.rel (%p15) target = $region8
    $region5: #{_lambda_.1} parent=1 // loop_body
      %s19 = ssub.s32 %s14, 1
      %s20 = ssub.s32 %s14, 2
      %s27 = sadd.s32 1, %s22
      %p28 = scmp.ge.s32.totalorder %s27, 1
      %s29 = scalar_select %p28, 0, %s27
      %s30 = sadd.s32 1, %s21
      %s31 = scalar_select %p28, %s30, %s21
      %p32 = scmp.ge.s32.totalorder %s31, 2
      %s33 = scalar_select %p32, 0, %s31
      %s34 = ssub.s32 %s21, %s33
      %s35 = ssub.s32 %s22, %s29
      %s36 = sor.u32 %s34, %s35
      %p37 = scmp.eq.s32.totalorder %s36, 0
      %s39 = sadd.s32 %s38, 1
      %s40 = scalar_select %p37, %s38, %s39
      %p43 = pneg %p37
      %p44 = scmp.eq.s32.totalorder %s14, 1
      %p45 = por %p43, %p44
      %p46 = scmp.ne.s32.totalorder %s38, %s41
      %p47 = scmp.eq.s32.totalorder %s14, 0
      %p48 = por %p46, %p47
      %p49 = scmp.ne.s32.totalorder %s38, %s41
      %p50 = scmp.eq.s32.totalorder %s19, 1
      %p51 = por %p49, %p50
      %p52 = scmp.ne.s32.totalorder %s41, %s42
      %p53 = scmp.eq.s32.totalorder %s19, 0
      %p54 = por %p52, %p53
      %p55 = scmp.ne.s32.totalorder %s41, %s42
      %p56 = scmp.eq.s32.totalorder %s20, 1
      %p57 = por %p55, %p56
      %p59 = scmp.ne.s32.totalorder %s42, %s58
      %p60 = scmp.eq.s32.totalorder %s20, 0
      %p61 = por %p59, %p60
      %s63 = sadd.s32 %s62, 1
      %p66 = scmp.eq.s32.totalorder %s14, 1
      %p67 = scmp.ne.s32.totalorder %s62, %s64
      %p68 = scmp.eq.s32.totalorder %s14, 0
      %p69 = por %p67, %p68
      %p70 = scmp.ne.s32.totalorder %s62, %s64
      %p71 = scmp.eq.s32.totalorder %s19, 1
      %p72 = por %p70, %p71
      %p73 = scmp.ne.s32.totalorder %s64, %s65
      %p74 = scmp.eq.s32.totalorder %s19, 0
      %p75 = por %p73, %p74
      %p76 = scmp.ne.s32.totalorder %s64, %s65
      %p77 = scmp.eq.s32.totalorder %s20, 1
      %p78 = por %p76, %p77
      %p80 = scmp.ne.s32.totalorder %s65, %s79
      %p81 = scmp.eq.s32.totalorder %s20, 0
      %p82 = por %p80, %p81
      %s84 = sadd.s32 %s83, 1
      %p87 = scmp.eq.s32.totalorder %s14, 1
      %p88 = scmp.ne.s32.totalorder %s83, %s85
      %p89 = scmp.eq.s32.totalorder %s14, 0
      %p90 = por %p88, %p89
      %p91 = scmp.ne.s32.totalorder %s83, %s85
      %p92 = scmp.eq.s32.totalorder %s19, 1
      %p93 = por %p91, %p92
      %p94 = scmp.ne.s32.totalorder %s85, %s86
      %p95 = scmp.eq.s32.totalorder %s19, 0
      %p96 = por %p94, %p95
      %p97 = scmp.ne.s32.totalorder %s85, %s86
      %p98 = scmp.eq.s32.totalorder %s20, 1
      %p99 = por %p97, %p98
      %p101 = scmp.ne.s32.totalorder %s86, %s100
      %p102 = scmp.eq.s32.totalorder %s20, 0
      %p103 = por %p101, %p102
      %s105 = sadd.s32 %s104, 1
      %p108 = scmp.eq.s32.totalorder %s14, 1
      %p109 = scmp.ne.s32.totalorder %s104, %s106
      %p110 = scmp.eq.s32.totalorder %s14, 0
      %p111 = por %p109, %p110
      %p112 = scmp.ne.s32.totalorder %s104, %s106
      %p113 = scmp.eq.s32.totalorder %s19, 1
      %p114 = por %p112, %p113
      %p115 = scmp.ne.s32.totalorder %s106, %s107
      %p116 = scmp.eq.s32.totalorder %s19, 0
      %p117 = por %p115, %p116
      %p118 = scmp.ne.s32.totalorder %s106, %s107
      %p119 = scmp.eq.s32.totalorder %s20, 1
      %p120 = por %p118, %p119
      %p122 = scmp.ne.s32.totalorder %s107, %s121
      %p123 = scmp.eq.s32.totalorder %s20, 0
      %p124 = por %p122, %p123
      %s126 = sadd.s32 %s125, 1
      %p129 = scmp.eq.s32.totalorder %s14, 1
      %p130 = scmp.ne.s32.totalorder %s125, %s127
      %p131 = scmp.eq.s32.totalorder %s14, 0
      %p132 = por %p130, %p131
      %p133 = scmp.ne.s32.totalorder %s125, %s127
      %p134 = scmp.eq.s32.totalorder %s19, 1
      %p135 = por %p133, %p134
      %p136 = scmp.ne.s32.totalorder %s127, %s128
      %p137 = scmp.eq.s32.totalorder %s19, 0
      %p138 = por %p136, %p137
      %p139 = scmp.ne.s32.totalorder %s127, %s128
      %p140 = scmp.eq.s32.totalorder %s20, 1
      %p141 = por %p139, %p140
      %p143 = scmp.ne.s32.totalorder %s128, %s142
      %p144 = scmp.eq.s32.totalorder %s20, 0
      %p145 = por %p143, %p144
      %s146 = ssub.s32 %s21, %s33
      %s147 = ssub.s32 %s22, %s29
      %s148 = sor.u32 %s146, %s147
      %p149 = scmp.eq.s32.totalorder %s148, 0
      %s151 = sadd.s32 %s150, 1
      %s152 = scalar_select %p149, %s150, %s151
      %p155 = pneg %p149
      %p156 = scmp.eq.s32.totalorder %s14, 1
      %p157 = por %p155, %p156
      %p158 = scmp.ne.s32.totalorder %s150, %s153
      %p159 = scmp.eq.s32.totalorder %s14, 0
      %p160 = por %p158, %p159
      %p161 = scmp.ne.s32.totalorder %s150, %s153
      %p162 = scmp.eq.s32.totalorder %s19, 1
      %p163 = por %p161, %p162
      %p164 = scmp.ne.s32.totalorder %s153, %s154
      %p165 = scmp.eq.s32.totalorder %s19, 0
      %p166 = por %p164, %p165
      %p167 = scmp.ne.s32.totalorder %s153, %s154
      %p168 = scmp.eq.s32.totalorder %s20, 1
      %p169 = por %p167, %p168
      %p171 = scmp.ne.s32.totalorder %s154, %s170
      %p172 = scmp.eq.s32.totalorder %s20, 0
      %p173 = por %p171, %p172
      %p174 = scmp.le.s32.totalorder 1, %s14
      %p175 = scmp.lt.s32.totalorder %s14, 3
      %p176 = pnand %p174, %p175
      %p177 = pneg %p176
      // Predicated region
      $region9: #{_lambda_.1} parent=5 // pred_check
        _
      $region10: #{_lambda_.1} parent=5 // pred_check_branch
        %179 = sbr.rel (%p176) target = $region12
      $region11: #{_lambda_.1} parent=5 // pred_region
        %s180 = ssub.s32 %s14, 1
        // Predicated region
        $region13: #{_lambda_.1} parent=11 // pred_check
          %p181 = pneg %p75
        $region14: #{_lambda_.1} parent=11 // pred_check_branch
          %183 = sbr.rel (%p181) target = $region16
        $region15: #{_lambda_.1} parent=11 // pred_region
          _
        $region16: #{_lambda_.1} parent=11 // pred_fallthru
          _
        // Predicated region
        $region17: #{_lambda_.1} parent=11 // pred_check
          %p184 = pneg %p96
        $region18: #{_lambda_.1} parent=11 // pred_check_branch
          %186 = sbr.rel (%p184) target = $region20
        $region19: #{_lambda_.1} parent=11 // pred_region
          _
        $region20: #{_lambda_.1} parent=11 // pred_fallthru
          _
        // Predicated region
        $region21: #{_lambda_.1} parent=11 // pred_check
          %p187 = pneg %p117
        $region22: #{_lambda_.1} parent=11 // pred_check_branch
          %189 = sbr.rel (%p187) target = $region24
        $region23: #{_lambda_.1} parent=11 // pred_region
          _
        $region24: #{_lambda_.1} parent=11 // pred_fallthru
          _
        // Predicated region
        $region25: #{_lambda_.1} parent=11 // pred_check
          %p190 = pneg %p138
        $region26: #{_lambda_.1} parent=11 // pred_check_branch
          %192 = sbr.rel (%p190) target = $region28
        $region27: #{_lambda_.1} parent=11 // pred_region
          _
        $region28: #{_lambda_.1} parent=11 // pred_fallthru
          _
      $region12: #{_lambda_.1} parent=5 // pred_fallthru
        _
      %p193 = scmp.lt.s32.totalorder %s14, 2
      // Predicated region
      $region29: #{_lambda_.1} parent=5 // pred_check
        %p194 = pneg %p193
      $region30: #{_lambda_.1} parent=5 // pred_check_branch
        %196 = sbr.rel (%p194) target = $region32
      $region31: #{_lambda_.1} parent=5 // pred_region
        // Predicated region
        $region33: #{_lambda_.1} parent=31 // pred_check
          %p197 = pneg %p48
        $region34: #{_lambda_.1} parent=31 // pred_check_branch
          %199 = sbr.rel (%p197) target = $region36
        $region35: #{_lambda_.1} parent=31 // pred_region
          %p200 = scmp.lt.s32.totalorder %s21, 1
          %s201 = scalar_select %p200, %s21, 1
          %p202 = scmp.lt.s32.totalorder %s22, 0
          %s203 = scalar_select %p202, %s22, 0
          %s204 = smul.addr %s203, 54
          %s205 = smul.addr %s201, 54
          %s206 = sadd.s32 %s204, %s205
          %s207 = smul.addr %s206, 8
          %s208 = scalar_lea.vmem %s0, %s207
        $region36: #{_lambda_.1} parent=31 // pred_fallthru
          _
      $region32: #{_lambda_.1} parent=5 // pred_fallthru
        _
      %p209 = scmp.le.s32.totalorder 1, %s14
      %p210 = scmp.lt.s32.totalorder %s14, 3
      %p211 = pnand %p209, %p210
      %p212 = pneg %p211
      // Predicated region
      $region37: #{_lambda_.1} parent=5 // pred_check
        _
      $region38: #{_lambda_.1} parent=5 // pred_check_branch
        %214 = sbr.rel (%p211) target = $region40
      $region39: #{_lambda_.1} parent=5 // pred_region
        %s215 = ssub.s32 %s14, 1
        %p216 = scmp.lt.s32.totalorder %s23, 1
        %s217 = scalar_select %p216, %s23, 1
        %p218 = scmp.lt.s32.totalorder %s24, 0
        %s219 = scalar_select %p218, %s24, 0
        %s220 = smul.addr %s219, 54
        %s221 = smul.addr %s217, 54
        %s222 = sadd.s32 %s220, %s221
        %s223 = smul.addr %s222, 8
        %s224 = scalar_lea.vmem %s0, %s223
        %p225 = pneg %p54
        %p226 = pneg %p51
        %p227 = pneg %p75
        %p228 = pneg %p72
        %p229 = pneg %p96
        %p230 = pneg %p93
        %p231 = pneg %p117
        %p232 = pneg %p114
        %p233 = pneg %p138
        %p234 = pneg %p135
        %p235 = pneg %p166
        %p236 = pneg %p163
        %s237 = sand.u32 %s153, 1
        %s238 = scalar_lea.sflag [#allocation4], %s237
        %s239 = sand.u32 %s153, 1
        %s240 = smul.addr %s239, 256
        %s241 = scalar_lea.vmem [#allocation3], %s240
        %p242 = scmp.lt.s32.totalorder %s23, 1
        %s243 = scalar_select %p242, %s23, 1
        %p244 = scmp.lt.s32.totalorder %s24, 0
        %s245 = scalar_select %p244, %s24, 0
        %s246 = smul.addr %s245, 54
        %s247 = smul.addr %s243, 54
        %s248 = sadd.s32 %s246, %s247
        %s249 = smul.addr %s248, 8
        %s250 = scalar_lea.vmem %s0, %s249
        %s251 = smul.u32 16, %s24
        %v252 = vld [vmem:[%s250] sm:$0xff]
        %v253 = vld [vmem:[%s250 + $0x8] sm:$0xff]
        %v254 = vld [vmem:[%s250 + $0x10] sm:$0xff]
        %v255 = vld [vmem:[%s250 + $0x18] sm:$0xff]
        %v256 = vld [vmem:[%s250 + $0x20] sm:$0xff]
        %v257 = vld [vmem:[%s250 + $0x28] sm:$0xff]
        %v258 = vld [vmem:[%s250 + $0x30] sm:$0xff]
        %v259 = vld [vmem:[%s250 + $0x38] sm:$0xff]
        %v260 = vld [vmem:[%s250 + $0x40] sm:$0xff]
        %v261 = vld [vmem:[%s250 + $0x48] sm:$0xff]
        %v262 = vld [vmem:[%s250 + $0x50] sm:$0xff]
        %v263 = vld [vmem:[%s250 + $0x58] sm:$0xff]
        %v264 = vld [vmem:[%s250 + $0x60] sm:$0xff]
        %v265 = vld [vmem:[%s250 + $0x68] sm:$0xff]
        %v266 = vld [vmem:[%s250 + $0x70] sm:$0xff]
        %v267 = vld [vmem:[%s250 + $0x78] sm:$0xff]
        %v268 = vld [vmem:[%s250 + $0x80] sm:$0xff]
        %v269 = vld [vmem:[%s250 + $0x88] sm:$0xff]
        %v270 = vld [vmem:[%s250 + $0x90] sm:$0xff]
        %v271 = vld [vmem:[%s250 + $0x98] sm:$0xff]
        %v272 = vld [vmem:[%s250 + $0xa0] sm:$0xff]
        %v273 = vld [vmem:[%s250 + $0xa8] sm:$0xff]
        %v274 = vld [vmem:[%s250 + $0xb0] sm:$0xff]
        %v275 = vld [vmem:[%s250 + $0xb8] sm:$0xff]
        %v276 = vld [vmem:[%s250 + $0xc0] sm:$0xff]
        %v277 = vld [vmem:[%s250 + $0xc8] sm:$0xff]
        %v278 = vld [vmem:[%s250 + $0xd0] sm:$0xff]
        %v279 = vld [vmem:[%s250 + $0xd8] sm:$0xff]
        %v280 = vld [vmem:[%s250 + $0xe0] sm:$0xff]
        %v281 = vld [vmem:[%s250 + $0xe8] sm:$0xff]
        %v282 = vld [vmem:[%s250 + $0xf0] sm:$0xff]
        %v283 = vld [vmem:[%s250 + $0xf8] sm:$0xff]
        %v284 = vld [vmem:[%s250 + $0x100] sm:$0xff]
        %v285 = vld [vmem:[%s250 + $0x108] sm:$0xff]
        %v286 = vld [vmem:[%s250 + $0x110] sm:$0xff]
        %v287 = vld [vmem:[%s250 + $0x118] sm:$0xff]
        %v288 = vld [vmem:[%s250 + $0x120] sm:$0xff]
        %v289 = vld [vmem:[%s250 + $0x128] sm:$0xff]
        %v290 = vld [vmem:[%s250 + $0x130] sm:$0xff]
        %v291 = vld [vmem:[%s250 + $0x138] sm:$0xff]
        %v292 = vld [vmem:[%s250 + $0x140] sm:$0xff]
        %v293 = vld [vmem:[%s250 + $0x148] sm:$0xff]
        %v294 = vld [vmem:[%s250 + $0x150] sm:$0xff]
        %v295 = vld [vmem:[%s250 + $0x158] sm:$0xff]
        %v296 = vld [vmem:[%s250 + $0x160] sm:$0xff]
        %v297 = vld [vmem:[%s250 + $0x168] sm:$0xff]
        %v298 = vld [vmem:[%s250 + $0x170] sm:$0xff]
        %v299 = vld [vmem:[%s250 + $0x178] sm:$0xff]
        %v300 = vld [vmem:[%s250 + $0x180] sm:$0xff]
        %v301 = vld [vmem:[%s250 + $0x188] sm:$0xff]
        %v302 = vld [vmem:[%s250 + $0x190] sm:$0xff]
        %v303 = vld [vmem:[%s250 + $0x198] sm:$0xff]
        %v304 = vld [vmem:[%s250 + $0x1a0] sm:$0xff]
        %v305 = vld [vmem:[%s250 + $0x1a8] sm:$0xff]
        %v306 = vld [vmem:[%s1] sm:$0xff]
        %v307 = vld [vmem:[%s1 + $0x8] sm:$0xff]
        %v308 = vld [vmem:[%s1 + $0x10] sm:$0xff]
        %v309 = vld [vmem:[%s1 + $0x18] sm:$0x7]
        %v310 = vld [vmem:[%s2] sm:$0x1]
        %v312 = vperm.slane %v310, 0
        %vm314 = vcmask 220160
        %v316 = vsel %vm314, %v252, 0
        %v319 = vsel %vm314, %v253, 0
        %v322 = vsel %vm314, %v254, 0
        %v325 = vsel %vm314, %v255, 0
        %v328 = vsel %vm314, %v256, 0
        %v331 = vsel %vm314, %v257, 0
        %v334 = vsel %vm314, %v258, 0
        %v337 = vsel %vm314, %v259, 0
        %v340 = vsel %vm314, %v260, 0
        %v343 = vsel %vm314, %v261, 0
        %v346 = vsel %vm314, %v262, 0
        %v349 = vsel %vm314, %v263, 0
        %v352 = vsel %vm314, %v264, 0
        %v355 = vsel %vm314, %v265, 0
        %v358 = vsel %vm314, %v266, 0
        %v361 = vsel %vm314, %v267, 0
        %v364 = vsel %vm314, %v268, 0
        %v367 = vsel %vm314, %v269, 0
        %v370 = vsel %vm314, %v270, 0
        %v373 = vsel %vm314, %v271, 0
        %v376 = vsel %vm314, %v272, 0
        %v379 = vsel %vm314, %v273, 0
        %v382 = vsel %vm314, %v274, 0
        %v385 = vsel %vm314, %v275, 0
        %v388 = vsel %vm314, %v276, 0
        %v391 = vsel %vm314, %v277, 0
        %v394 = vsel %vm314, %v278, 0
        %v397 = vsel %vm314, %v279, 0
        %v400 = vsel %vm314, %v280, 0
        %v403 = vsel %vm314, %v281, 0
        %v406 = vsel %vm314, %v282, 0
        %v409 = vsel %vm314, %v283, 0
        %v412 = vsel %vm314, %v284, 0
        %v415 = vsel %vm314, %v285, 0
        %v418 = vsel %vm314, %v286, 0
        %v421 = vsel %vm314, %v287, 0
        %v424 = vsel %vm314, %v288, 0
        %v427 = vsel %vm314, %v289, 0
        %v430 = vsel %vm314, %v290, 0
        %v433 = vsel %vm314, %v291, 0
        %v436 = vsel %vm314, %v292, 0
        %v439 = vsel %vm314, %v293, 0
        %v442 = vsel %vm314, %v294, 0
        %v445 = vsel %vm314, %v295, 0
        %v448 = vsel %vm314, %v296, 0
        %v451 = vsel %vm314, %v297, 0
        %v454 = vsel %vm314, %v298, 0
        %v457 = vsel %vm314, %v299, 0
        %v460 = vsel %vm314, %v300, 0
        %v463 = vsel %vm314, %v301, 0
        %v466 = vsel %vm314, %v302, 0
        %v469 = vsel %vm314, %v303, 0
        %v472 = vsel %vm314, %v304, 0
        %v475 = vsel %vm314, %v305, 0
        %vm477 = vcmask 1042432
        %v479 = vsel %vm477, %v309, 0
        %481 = vmatpush.msra.mxu0 0.0
        %482 = vmatpush.msra.mxu0 0.0
        %483 = vmatpush.msra.mxu0 0.0
        %484 = vmatpush.msra.mxu0 0.0
        %485 = vmatpush.msra.mxu0 0.0
        %486 = vmatpush.msra.mxu0 0.0
        %487 = vmatpush.msra.mxu0 0.0
        %488 = vmatpush.msra.mxu0 0.0
        %489 = vmatpush.msra.mxu0 0.0
        %490 = vmatpush.msra.mxu0 0.0
        %491 = vmatpush.msra.mxu0 0.0
        %492 = vmatpush.msra.mxu0 0.0
        %493 = vmatpush.msra.mxu0 %v479
        %494 = vmatpush.msra.mxu0 %v308
        %495 = vmatpush.msra.mxu0 %v307
        %496 = vmatpush.msra.mxu0 %v306
        %497 = vmatmul.f32.gmra.mxu0 %v316
        %v498 = vpop.f32.mrf.mxu0
        %v499 = vadd.f32 %v312, %v498
        %500 = vmatmul.f32.gmra.mxu0 %v319
        %v501 = vpop.f32.mrf.mxu0
        %v502 = vadd.f32 %v312, %v501
        %503 = vmatmul.f32.gmra.mxu0 %v322
        %v504 = vpop.f32.mrf.mxu0
        %v505 = vadd.f32 %v312, %v504
        %506 = vmatmul.f32.gmra.mxu0 %v325
        %v507 = vpop.f32.mrf.mxu0
        %v508 = vadd.f32 %v312, %v507
        %509 = vmatmul.f32.gmra.mxu0 %v328
        %v510 = vpop.f32.mrf.mxu0
        %v511 = vadd.f32 %v312, %v510
        %512 = vmatmul.f32.gmra.mxu0 %v331
        %v513 = vpop.f32.mrf.mxu0
        %v514 = vadd.f32 %v312, %v513
        %515 = vmatmul.f32.gmra.mxu0 %v334
        %v516 = vpop.f32.mrf.mxu0
        %v517 = vadd.f32 %v312, %v516
        %518 = vmatmul.f32.gmra.mxu0 %v337
        %v519 = vpop.f32.mrf.mxu0
        %v520 = vadd.f32 %v312, %v519
        %521 = vmatmul.f32.gmra.mxu0 %v340
        %v522 = vpop.f32.mrf.mxu0
        %v523 = vadd.f32 %v312, %v522
        %524 = vmatmul.f32.gmra.mxu0 %v343
        %v525 = vpop.f32.mrf.mxu0
        %v526 = vadd.f32 %v312, %v525
        %527 = vmatmul.f32.gmra.mxu0 %v346
        %v528 = vpop.f32.mrf.mxu0
        %v529 = vadd.f32 %v312, %v528
        %530 = vmatmul.f32.gmra.mxu0 %v349
        %v531 = vpop.f32.mrf.mxu0
        %v532 = vadd.f32 %v312, %v531
        %533 = vmatmul.f32.gmra.mxu0 %v352
        %v534 = vpop.f32.mrf.mxu0
        %v535 = vadd.f32 %v312, %v534
        %536 = vmatmul.f32.gmra.mxu0 %v355
        %v537 = vpop.f32.mrf.mxu0
        %v538 = vadd.f32 %v312, %v537
        %539 = vmatmul.f32.gmra.mxu0 %v358
        %v540 = vpop.f32.mrf.mxu0
        %v541 = vadd.f32 %v312, %v540
        %542 = vmatmul.f32.gmra.mxu0 %v361
        %v543 = vpop.f32.mrf.mxu0
        %v544 = vadd.f32 %v312, %v543
        %545 = vmatmul.f32.gmra.mxu0 %v364
        %v546 = vpop.f32.mrf.mxu0
        %v547 = vadd.f32 %v312, %v546
        %548 = vmatmul.f32.gmra.mxu0 %v367
        %v549 = vpop.f32.mrf.mxu0
        %v550 = vadd.f32 %v312, %v549
        %551 = vmatmul.f32.gmra.mxu0 %v370
        %v552 = vpop.f32.mrf.mxu0
        %v553 = vadd.f32 %v312, %v552
        %554 = vmatmul.f32.gmra.mxu0 %v373
        %v555 = vpop.f32.mrf.mxu0
        %v556 = vadd.f32 %v312, %v555
        %557 = vmatmul.f32.gmra.mxu0 %v376
        %v558 = vpop.f32.mrf.mxu0
        %v559 = vadd.f32 %v312, %v558
        %560 = vmatmul.f32.gmra.mxu0 %v379
        %v561 = vpop.f32.mrf.mxu0
        %v562 = vadd.f32 %v312, %v561
        %563 = vmatmul.f32.gmra.mxu0 %v382
        %v564 = vpop.f32.mrf.mxu0
        %v565 = vadd.f32 %v312, %v564
        %566 = vmatmul.f32.gmra.mxu0 %v385
        %v567 = vpop.f32.mrf.mxu0
        %v568 = vadd.f32 %v312, %v567
        %569 = vmatmul.f32.gmra.mxu0 %v388
        %v570 = vpop.f32.mrf.mxu0
        %v571 = vadd.f32 %v312, %v570
        %572 = vmatmul.f32.gmra.mxu0 %v391
        %v573 = vpop.f32.mrf.mxu0
        %v574 = vadd.f32 %v312, %v573
        %575 = vmatmul.f32.gmra.mxu0 %v394
        %v576 = vpop.f32.mrf.mxu0
        %v577 = vadd.f32 %v312, %v576
        %578 = vmatmul.f32.gmra.mxu0 %v397
        %v579 = vpop.f32.mrf.mxu0
        %v580 = vadd.f32 %v312, %v579
        %581 = vmatmul.f32.gmra.mxu0 %v400
        %v582 = vpop.f32.mrf.mxu0
        %v583 = vadd.f32 %v312, %v582
        %584 = vmatmul.f32.gmra.mxu0 %v403
        %v585 = vpop.f32.mrf.mxu0
        %v586 = vadd.f32 %v312, %v585
        %587 = vmatmul.f32.gmra.mxu0 %v406
        %v588 = vpop.f32.mrf.mxu0
        %v589 = vadd.f32 %v312, %v588
        %590 = vmatmul.f32.gmra.mxu0 %v409
        %v591 = vpop.f32.mrf.mxu0
        %v592 = vadd.f32 %v312, %v591
        %593 = vmatmul.f32.gmra.mxu0 %v412
        %v594 = vpop.f32.mrf.mxu0
        %v595 = vadd.f32 %v312, %v594
        %596 = vmatmul.f32.gmra.mxu0 %v415
        %v597 = vpop.f32.mrf.mxu0
        %v598 = vadd.f32 %v312, %v597
        %599 = vmatmul.f32.gmra.mxu0 %v418
        %v600 = vpop.f32.mrf.mxu0
        %v601 = vadd.f32 %v312, %v600
        %602 = vmatmul.f32.gmra.mxu0 %v421
        %v603 = vpop.f32.mrf.mxu0
        %v604 = vadd.f32 %v312, %v603
        %605 = vmatmul.f32.gmra.mxu0 %v424
        %v606 = vpop.f32.mrf.mxu0
        %v607 = vadd.f32 %v312, %v606
        %608 = vmatmul.f32.gmra.mxu0 %v427
        %v609 = vpop.f32.mrf.mxu0
        %v610 = vadd.f32 %v312, %v609
        %611 = vmatmul.f32.gmra.mxu0 %v430
        %v612 = vpop.f32.mrf.mxu0
        %v613 = vadd.f32 %v312, %v612
        %614 = vmatmul.f32.gmra.mxu0 %v433
        %v615 = vpop.f32.mrf.mxu0
        %v616 = vadd.f32 %v312, %v615
        %617 = vmatmul.f32.gmra.mxu0 %v436
        %v618 = vpop.f32.mrf.mxu0
        %v619 = vadd.f32 %v312, %v618
        %620 = vmatmul.f32.gmra.mxu0 %v439
        %v621 = vpop.f32.mrf.mxu0
        %v622 = vadd.f32 %v312, %v621
        %623 = vmatmul.f32.gmra.mxu0 %v442
        %v624 = vpop.f32.mrf.mxu0
        %v625 = vadd.f32 %v312, %v624
        %626 = vmatmul.f32.gmra.mxu0 %v445
        %v627 = vpop.f32.mrf.mxu0
        %v628 = vadd.f32 %v312, %v627
        %629 = vmatmul.f32.gmra.mxu0 %v448
        %v630 = vpop.f32.mrf.mxu0
        %v631 = vadd.f32 %v312, %v630
        %632 = vmatmul.f32.gmra.mxu0 %v451
        %v633 = vpop.f32.mrf.mxu0
        %v634 = vadd.f32 %v312, %v633
        %635 = vmatmul.f32.gmra.mxu0 %v454
        %v636 = vpop.f32.mrf.mxu0
        %v637 = vadd.f32 %v312, %v636
        %638 = vmatmul.f32.gmra.mxu0 %v457
        %v639 = vpop.f32.mrf.mxu0
        %v640 = vadd.f32 %v312, %v639
        %641 = vmatmul.f32.gmra.mxu0 %v460
        %v642 = vpop.f32.mrf.mxu0
        %v643 = vadd.f32 %v312, %v642
        %644 = vmatmul.f32.gmra.mxu0 %v463
        %v645 = vpop.f32.mrf.mxu0
        %v646 = vadd.f32 %v312, %v645
        %647 = vmatmul.f32.gmra.mxu0 %v466
        %v648 = vpop.f32.mrf.mxu0
        %v649 = vadd.f32 %v312, %v648
        %650 = vmatmul.f32.gmra.mxu0 %v469
        %v651 = vpop.f32.mrf.mxu0
        %v652 = vadd.f32 %v312, %v651
        %653 = vmatmul.f32.gmra.mxu0 %v472
        %v654 = vpop.f32.mrf.mxu0
        %v655 = vadd.f32 %v312, %v654
        %656 = vmatmul.f32.gmra.mxu0 %v475
        %v657 = vpop.f32.mrf.mxu0
        %v658 = vadd.f32 %v312, %v657
        %659 = vdwg.mxu0
        %v660 = vmax.f32 %v499, 0.0
        %v661 = vmax.f32 %v502, 0.0
        %v662 = vmax.f32 %v505, 0.0
        %v663 = vmax.f32 %v508, 0.0
        %v664 = vmax.f32 %v511, 0.0
        %v665 = vmax.f32 %v514, 0.0
        %v666 = vmax.f32 %v517, 0.0
        %v667 = vmax.f32 %v520, 0.0
        %v668 = vmax.f32 %v523, 0.0
        %v669 = vmax.f32 %v526, 0.0
        %v670 = vmax.f32 %v529, 0.0
        %v671 = vmax.f32 %v532, 0.0
        %v672 = vmax.f32 %v535, 0.0
        %v673 = vmax.f32 %v538, 0.0
        %v674 = vmax.f32 %v541, 0.0
        %v675 = vmax.f32 %v544, 0.0
        %v676 = vmax.f32 %v547, 0.0
        %v677 = vmax.f32 %v550, 0.0
        %v678 = vmax.f32 %v553, 0.0
        %v679 = vmax.f32 %v556, 0.0
        %v680 = vmax.f32 %v559, 0.0
        %v681 = vmax.f32 %v562, 0.0
        %v682 = vmax.f32 %v565, 0.0
        %v683 = vmax.f32 %v568, 0.0
        %v684 = vmax.f32 %v571, 0.0
        %v685 = vmax.f32 %v574, 0.0
        %v686 = vmax.f32 %v577, 0.0
        %v687 = vmax.f32 %v580, 0.0
        %v688 = vmax.f32 %v583, 0.0
        %v689 = vmax.f32 %v586, 0.0
        %v690 = vmax.f32 %v589, 0.0
        %v691 = vmax.f32 %v592, 0.0
        %v692 = vmax.f32 %v595, 0.0
        %v693 = vmax.f32 %v598, 0.0
        %v694 = vmax.f32 %v601, 0.0
        %v695 = vmax.f32 %v604, 0.0
        %v696 = vmax.f32 %v607, 0.0
        %v697 = vmax.f32 %v610, 0.0
        %v698 = vmax.f32 %v613, 0.0
        %v699 = vmax.f32 %v616, 0.0
        %v700 = vmax.f32 %v619, 0.0
        %v701 = vmax.f32 %v622, 0.0
        %v702 = vmax.f32 %v625, 0.0
        %v703 = vmax.f32 %v628, 0.0
        %v704 = vmax.f32 %v631, 0.0
        %v705 = vmax.f32 %v634, 0.0
        %v706 = vmax.f32 %v637, 0.0
        %v707 = vmax.f32 %v640, 0.0
        %v708 = vmax.f32 %v643, 0.0
        %v709 = vmax.f32 %v646, 0.0
        %v710 = vmax.f32 %v649, 0.0
        %v711 = vmax.f32 %v652, 0.0
        %v712 = vmax.f32 %v655, 0.0
        %v713 = vmax.f32 %v658, 0.0
        %vm714 = vcmask 523264
        %715 = vst.msk [vmem:[#allocation2] sm:$0xff] %vm714, %v660
        %716 = vst.msk [vmem:[#allocation2 + $0x10] sm:$0xff] %vm714, %v661
        %717 = vst.msk [vmem:[#allocation2 + $0x20] sm:$0xff] %vm714, %v663
        %718 = vst.msk [vmem:[#allocation2 + $0x30] sm:$0xff] %vm714, %v664
        %719 = vst.msk [vmem:[#allocation2 + $0x40] sm:$0xff] %vm714, %v666
        %720 = vst.msk [vmem:[#allocation2 + $0x50] sm:$0xff] %vm714, %v667
        %721 = vst.msk [vmem:[#allocation2 + $0x60] sm:$0xff] %vm714, %v669
        %722 = vst.msk [vmem:[#allocation2 + $0x70] sm:$0xff] %vm714, %v670
        %723 = vst.msk [vmem:[#allocation2 + $0x80] sm:$0xff] %vm714, %v672
        %724 = vst.msk [vmem:[#allocation2 + $0x90] sm:$0xff] %vm714, %v673
        %725 = vst.msk [vmem:[#allocation2 + $0xa0] sm:$0xff] %vm714, %v675
        %726 = vst.msk [vmem:[#allocation2 + $0xb0] sm:$0xff] %vm714, %v676
        %727 = vst.msk [vmem:[#allocation2 + $0xc0] sm:$0xff] %vm714, %v678
        %728 = vst.msk [vmem:[#allocation2 + $0xd0] sm:$0xff] %vm714, %v679
        %729 = vst.msk [vmem:[#allocation2 + $0xe0] sm:$0xff] %vm714, %v681
        %730 = vst.msk [vmem:[#allocation2 + $0xf0] sm:$0xff] %vm714, %v682
        %731 = vst.msk [vmem:[#allocation2 + $0x100] sm:$0xff] %vm714, %v684
        %732 = vst.msk [vmem:[#allocation2 + $0x110] sm:$0xff] %vm714, %v685
        %733 = vst.msk [vmem:[#allocation2 + $0x120] sm:$0xff] %vm714, %v687
        %734 = vst.msk [vmem:[#allocation2 + $0x130] sm:$0xff] %vm714, %v688
        %735 = vst.msk [vmem:[#allocation2 + $0x140] sm:$0xff] %vm714, %v690
        %736 = vst.msk [vmem:[#allocation2 + $0x150] sm:$0xff] %vm714, %v691
        %737 = vst.msk [vmem:[#allocation2 + $0x160] sm:$0xff] %vm714, %v693
        %738 = vst.msk [vmem:[#allocation2 + $0x170] sm:$0xff] %vm714, %v694
        %739 = vst.msk [vmem:[#allocation2 + $0x180] sm:$0xff] %vm714, %v696
        %740 = vst.msk [vmem:[#allocation2 + $0x190] sm:$0xff] %vm714, %v697
        %741 = vst.msk [vmem:[#allocation2 + $0x1a0] sm:$0xff] %vm714, %v699
        %742 = vst.msk [vmem:[#allocation2 + $0x1b0] sm:$0xff] %vm714, %v700
        %743 = vst.msk [vmem:[#allocation2 + $0x1c0] sm:$0xff] %vm714, %v702
        %744 = vst.msk [vmem:[#allocation2 + $0x1d0] sm:$0xff] %vm714, %v703
        %745 = vst.msk [vmem:[#allocation2 + $0x1e0] sm:$0xff] %vm714, %v705
        %746 = vst.msk [vmem:[#allocation2 + $0x1f0] sm:$0xff] %vm714, %v706
        %747 = vst.msk [vmem:[#allocation2 + $0x200] sm:$0xff] %vm714, %v708
        %748 = vst.msk [vmem:[#allocation2 + $0x210] sm:$0xff] %vm714, %v709
        %749 = vst.msk [vmem:[#allocation2 + $0x220] sm:$0xff] %vm714, %v711
        %750 = vst.msk [vmem:[#allocation2 + $0x230] sm:$0xff] %vm714, %v712
        %vm805 = vcmask 1046528
        %v806 = vrot.slane %v660, 1
        %v807 = vrot.slane %v661, 1
        %v808 = vsel %vm805, %v806, %v807
        %v809 = vrot.slane %v662, 1
        %v810 = vsel %vm805, %v807, %v809
        %v811 = vrot.slane %v663, 1
        %v812 = vrot.slane %v664, 1
        %v813 = vsel %vm805, %v811, %v812
        %v814 = vrot.slane %v665, 1
        %v815 = vsel %vm805, %v812, %v814
        %v816 = vrot.slane %v666, 1
        %v817 = vrot.slane %v667, 1
        %v818 = vsel %vm805, %v816, %v817
        %v819 = vrot.slane %v668, 1
        %v820 = vsel %vm805, %v817, %v819
        %v821 = vrot.slane %v669, 1
        %v822 = vrot.slane %v670, 1
        %v823 = vsel %vm805, %v821, %v822
        %v824 = vrot.slane %v671, 1
        %v825 = vsel %vm805, %v822, %v824
        %v826 = vrot.slane %v672, 1
        %v827 = vrot.slane %v673, 1
        %v828 = vsel %vm805, %v826, %v827
        %v829 = vrot.slane %v674, 1
        %v830 = vsel %vm805, %v827, %v829
        %v831 = vrot.slane %v675, 1
        %v832 = vrot.slane %v676, 1
        %v833 = vsel %vm805, %v831, %v832
        %v834 = vrot.slane %v677, 1
        %v835 = vsel %vm805, %v832, %v834
        %v836 = vrot.slane %v678, 1
        %v837 = vrot.slane %v679, 1
        %v838 = vsel %vm805, %v836, %v837
        %v839 = vrot.slane %v680, 1
        %v840 = vsel %vm805, %v837, %v839
        %v841 = vrot.slane %v681, 1
        %v842 = vrot.slane %v682, 1
        %v843 = vsel %vm805, %v841, %v842
        %v844 = vrot.slane %v683, 1
        %v845 = vsel %vm805, %v842, %v844
        %v846 = vrot.slane %v684, 1
        %v847 = vrot.slane %v685, 1
        %v848 = vsel %vm805, %v846, %v847
        %v849 = vrot.slane %v686, 1
        %v850 = vsel %vm805, %v847, %v849
        %v851 = vrot.slane %v687, 1
        %v852 = vrot.slane %v688, 1
        %v853 = vsel %vm805, %v851, %v852
        %v854 = vrot.slane %v689, 1
        %v855 = vsel %vm805, %v852, %v854
        %v856 = vrot.slane %v690, 1
        %v857 = vrot.slane %v691, 1
        %v858 = vsel %vm805, %v856, %v857
        %v859 = vrot.slane %v692, 1
        %v860 = vsel %vm805, %v857, %v859
        %v861 = vrot.slane %v693, 1
        %v862 = vrot.slane %v694, 1
        %v863 = vsel %vm805, %v861, %v862
        %v864 = vrot.slane %v695, 1
        %v865 = vsel %vm805, %v862, %v864
        %v866 = vrot.slane %v696, 1
        %v867 = vrot.slane %v697, 1
        %v868 = vsel %vm805, %v866, %v867
        %v869 = vrot.slane %v698, 1
        %v870 = vsel %vm805, %v867, %v869
        %v871 = vrot.slane %v699, 1
        %v872 = vrot.slane %v700, 1
        %v873 = vsel %vm805, %v871, %v872
        %v874 = vrot.slane %v701, 1
        %v875 = vsel %vm805, %v872, %v874
        %v876 = vrot.slane %v702, 1
        %v877 = vrot.slane %v703, 1
        %v878 = vsel %vm805, %v876, %v877
        %v879 = vrot.slane %v704, 1
        %v880 = vsel %vm805, %v877, %v879
        %v881 = vrot.slane %v705, 1
        %v882 = vrot.slane %v706, 1
        %v883 = vsel %vm805, %v881, %v882
        %v884 = vrot.slane %v707, 1
        %v885 = vsel %vm805, %v882, %v884
        %v886 = vrot.slane %v708, 1
        %v887 = vrot.slane %v709, 1
        %v888 = vsel %vm805, %v886, %v887
        %v889 = vrot.slane %v710, 1
        %v890 = vsel %vm805, %v887, %v889
        %v891 = vrot.slane %v711, 1
        %v892 = vrot.slane %v712, 1
        %v893 = vsel %vm805, %v891, %v892
        %v894 = vrot.slane %v713, 1
        %v895 = vsel %vm805, %v892, %v894
        %896 = vrot.lane.b32.xlu0 %v808, 64
        %v897 = vpop.permute.xlu0 %896
        %898 = vrot.lane.b32.xlu0 %v810, 64
        %v899 = vpop.permute.xlu0 %898
        %900 = vrot.lane.b32.xlu0 %v813, 64
        %v901 = vpop.permute.xlu0 %900
        %902 = vrot.lane.b32.xlu0 %v815, 64
        %v903 = vpop.permute.xlu0 %902
        %904 = vrot.lane.b32.xlu0 %v818, 64
        %v905 = vpop.permute.xlu0 %904
        %906 = vrot.lane.b32.xlu0 %v820, 64
        %v907 = vpop.permute.xlu0 %906
        %908 = vrot.lane.b32.xlu0 %v823, 64
        %v909 = vpop.permute.xlu0 %908
        %910 = vrot.lane.b32.xlu0 %v825, 64
        %v911 = vpop.permute.xlu0 %910
        %912 = vrot.lane.b32.xlu0 %v828, 64
        %v913 = vpop.permute.xlu0 %912
        %914 = vrot.lane.b32.xlu0 %v830, 64
        %v915 = vpop.permute.xlu0 %914
        %916 = vrot.lane.b32.xlu0 %v833, 64
        %v917 = vpop.permute.xlu0 %916
        %918 = vrot.lane.b32.xlu0 %v835, 64
        %v919 = vpop.permute.xlu0 %918
        %920 = vrot.lane.b32.xlu0 %v838, 64
        %v921 = vpop.permute.xlu0 %920
        %922 = vrot.lane.b32.xlu0 %v840, 64
        %v923 = vpop.permute.xlu0 %922
        %924 = vrot.lane.b32.xlu0 %v843, 64
        %v925 = vpop.permute.xlu0 %924
        %926 = vrot.lane.b32.xlu0 %v845, 64
        %v927 = vpop.permute.xlu0 %926
        %928 = vrot.lane.b32.xlu0 %v848, 64
        %v929 = vpop.permute.xlu0 %928
        %930 = vrot.lane.b32.xlu0 %v850, 64
        %v931 = vpop.permute.xlu0 %930
        %932 = vrot.lane.b32.xlu0 %v853, 64
        %v933 = vpop.permute.xlu0 %932
        %934 = vrot.lane.b32.xlu0 %v855, 64
        %v935 = vpop.permute.xlu0 %934
        %936 = vrot.lane.b32.xlu0 %v858, 64
        %v937 = vpop.permute.xlu0 %936
        %938 = vrot.lane.b32.xlu0 %v860, 64
        %v939 = vpop.permute.xlu0 %938
        %940 = vrot.lane.b32.xlu0 %v863, 64
        %v941 = vpop.permute.xlu0 %940
        %942 = vrot.lane.b32.xlu0 %v865, 64
        %v943 = vpop.permute.xlu0 %942
        %944 = vrot.lane.b32.xlu0 %v868, 64
        %v945 = vpop.permute.xlu0 %944
        %946 = vrot.lane.b32.xlu0 %v870, 64
        %v947 = vpop.permute.xlu0 %946
        %948 = vrot.lane.b32.xlu0 %v873, 64
        %v949 = vpop.permute.xlu0 %948
        %950 = vrot.lane.b32.xlu0 %v875, 64
        %v951 = vpop.permute.xlu0 %950
        %952 = vrot.lane.b32.xlu0 %v878, 64
        %v953 = vpop.permute.xlu0 %952
        %954 = vrot.lane.b32.xlu0 %v880, 64
        %v955 = vpop.permute.xlu0 %954
        %956 = vrot.lane.b32.xlu0 %v883, 64
        %v957 = vpop.permute.xlu0 %956
        %958 = vrot.lane.b32.xlu0 %v885, 64
        %v959 = vpop.permute.xlu0 %958
        %960 = vrot.lane.b32.xlu0 %v888, 64
        %v961 = vpop.permute.xlu0 %960
        %962 = vrot.lane.b32.xlu0 %v890, 64
        %v963 = vpop.permute.xlu0 %962
        %964 = vrot.lane.b32.xlu0 %v893, 64
        %v965 = vpop.permute.xlu0 %964
        %966 = vrot.lane.b32.xlu0 %v895, 64
        %v967 = vpop.permute.xlu0 %966
        %vm1004 = vcmask 1048064
        %1005 = vst.msk [vmem:[#allocation2] sm:$0xff] %vm1004, %v897
        %1006 = vst.msk [vmem:[#allocation2 + $0x10] sm:$0xff] %vm1004, %v899
        %1007 = vst.msk [vmem:[#allocation2 + $0x20] sm:$0xff] %vm1004, %v901
        %1008 = vst.msk [vmem:[#allocation2 + $0x30] sm:$0xff] %vm1004, %v903
        %1009 = vst.msk [vmem:[#allocation2 + $0x40] sm:$0xff] %vm1004, %v905
        %1010 = vst.msk [vmem:[#allocation2 + $0x50] sm:$0xff] %vm1004, %v907
        %1011 = vst.msk [vmem:[#allocation2 + $0x60] sm:$0xff] %vm1004, %v909
        %1012 = vst.msk [vmem:[#allocation2 + $0x70] sm:$0xff] %vm1004, %v911
        %1013 = vst.msk [vmem:[#allocation2 + $0x80] sm:$0xff] %vm1004, %v913
        %1014 = vst.msk [vmem:[#allocation2 + $0x90] sm:$0xff] %vm1004, %v915
        %1015 = vst.msk [vmem:[#allocation2 + $0xa0] sm:$0xff] %vm1004, %v917
        %1016 = vst.msk [vmem:[#allocation2 + $0xb0] sm:$0xff] %vm1004, %v919
        %1017 = vst.msk [vmem:[#allocation2 + $0xc0] sm:$0xff] %vm1004, %v921
        %1018 = vst.msk [vmem:[#allocation2 + $0xd0] sm:$0xff] %vm1004, %v923
        %1019 = vst.msk [vmem:[#allocation2 + $0xe0] sm:$0xff] %vm1004, %v925
        %1020 = vst.msk [vmem:[#allocation2 + $0xf0] sm:$0xff] %vm1004, %v927
        %1021 = vst.msk [vmem:[#allocation2 + $0x100] sm:$0xff] %vm1004, %v929
        %1022 = vst.msk [vmem:[#allocation2 + $0x110] sm:$0xff] %vm1004, %v931
        %1023 = vst.msk [vmem:[#allocation2 + $0x120] sm:$0xff] %vm1004, %v933
        %1024 = vst.msk [vmem:[#allocation2 + $0x130] sm:$0xff] %vm1004, %v935
        %1025 = vst.msk [vmem:[#allocation2 + $0x140] sm:$0xff] %vm1004, %v937
        %1026 = vst.msk [vmem:[#allocation2 + $0x150] sm:$0xff] %vm1004, %v939
        %1027 = vst.msk [vmem:[#allocation2 + $0x160] sm:$0xff] %vm1004, %v941
        %1028 = vst.msk [vmem:[#allocation2 + $0x170] sm:$0xff] %vm1004, %v943
        %1029 = vst.msk [vmem:[#allocation2 + $0x180] sm:$0xff] %vm1004, %v945
        %1030 = vst.msk [vmem:[#allocation2 + $0x190] sm:$0xff] %vm1004, %v947
        %1031 = vst.msk [vmem:[#allocation2 + $0x1a0] sm:$0xff] %vm1004, %v949
        %1032 = vst.msk [vmem:[#allocation2 + $0x1b0] sm:$0xff] %vm1004, %v951
        %1033 = vst.msk [vmem:[#allocation2 + $0x1c0] sm:$0xff] %vm1004, %v953
        %1034 = vst.msk [vmem:[#allocation2 + $0x1d0] sm:$0xff] %vm1004, %v955
        %1035 = vst.msk [vmem:[#allocation2 + $0x1e0] sm:$0xff] %vm1004, %v957
        %1036 = vst.msk [vmem:[#allocation2 + $0x1f0] sm:$0xff] %vm1004, %v959
        %1037 = vst.msk [vmem:[#allocation2 + $0x200] sm:$0xff] %vm1004, %v961
        %1038 = vst.msk [vmem:[#allocation2 + $0x210] sm:$0xff] %vm1004, %v963
        %1039 = vst.msk [vmem:[#allocation2 + $0x220] sm:$0xff] %vm1004, %v965
        %1040 = vst.msk [vmem:[#allocation2 + $0x230] sm:$0xff] %vm1004, %v967
        %vm1041 = vcmask 1045504
        %v1042 = vrot.slane %v660, 2
        %v1043 = vrot.slane %v661, 2
        %v1044 = vsel %vm1041, %v1042, %v1043
        %v1045 = vrot.slane %v662, 2
        %v1046 = vsel %vm1041, %v1043, %v1045
        %v1047 = vrot.slane %v663, 2
        %v1048 = vrot.slane %v664, 2
        %v1049 = vsel %vm1041, %v1047, %v1048
        %v1050 = vrot.slane %v665, 2
        %v1051 = vsel %vm1041, %v1048, %v1050
        %v1052 = vrot.slane %v666, 2
        %v1053 = vrot.slane %v667, 2
        %v1054 = vsel %vm1041, %v1052, %v1053
        %v1055 = vrot.slane %v668, 2
        %v1056 = vsel %vm1041, %v1053, %v1055
        %v1057 = vrot.slane %v669, 2
        %v1058 = vrot.slane %v670, 2
        %v1059 = vsel %vm1041, %v1057, %v1058
        %v1060 = vrot.slane %v671, 2
        %v1061 = vsel %vm1041, %v1058, %v1060
        %v1062 = vrot.slane %v672, 2
        %v1063 = vrot.slane %v673, 2
        %v1064 = vsel %vm1041, %v1062, %v1063
        %v1065 = vrot.slane %v674, 2
        %v1066 = vsel %vm1041, %v1063, %v1065
        %v1067 = vrot.slane %v675, 2
        %v1068 = vrot.slane %v676, 2
        %v1069 = vsel %vm1041, %v1067, %v1068
        %v1070 = vrot.slane %v677, 2
        %v1071 = vsel %vm1041, %v1068, %v1070
        %v1072 = vrot.slane %v678, 2
        %v1073 = vrot.slane %v679, 2
        %v1074 = vsel %vm1041, %v1072, %v1073
        %v1075 = vrot.slane %v680, 2
        %v1076 = vsel %vm1041, %v1073, %v1075
        %v1077 = vrot.slane %v681, 2
        %v1078 = vrot.slane %v682, 2
        %v1079 = vsel %vm1041, %v1077, %v1078
        %v1080 = vrot.slane %v683, 2
        %v1081 = vsel %vm1041, %v1078, %v1080
        %v1082 = vrot.slane %v684, 2
        %v1083 = vrot.slane %v685, 2
        %v1084 = vsel %vm1041, %v1082, %v1083
        %v1085 = vrot.slane %v686, 2
        %v1086 = vsel %vm1041, %v1083, %v1085
        %v1087 = vrot.slane %v687, 2
        %v1088 = vrot.slane %v688, 2
        %v1089 = vsel %vm1041, %v1087, %v1088
        %v1090 = vrot.slane %v689, 2
        %v1091 = vsel %vm1041, %v1088, %v1090
        %v1092 = vrot.slane %v690, 2
        %v1093 = vrot.slane %v691, 2
        %v1094 = vsel %vm1041, %v1092, %v1093
        %v1095 = vrot.slane %v692, 2
        %v1096 = vsel %vm1041, %v1093, %v1095
        %v1097 = vrot.slane %v693, 2
        %v1098 = vrot.slane %v694, 2
        %v1099 = vsel %vm1041, %v1097, %v1098
        %v1100 = vrot.slane %v695, 2
        %v1101 = vsel %vm1041, %v1098, %v1100
        %v1102 = vrot.slane %v696, 2
        %v1103 = vrot.slane %v697, 2
        %v1104 = vsel %vm1041, %v1102, %v1103
        %v1105 = vrot.slane %v698, 2
        %v1106 = vsel %vm1041, %v1103, %v1105
        %v1107 = vrot.slane %v699, 2
        %v1108 = vrot.slane %v700, 2
        %v1109 = vsel %vm1041, %v1107, %v1108
        %v1110 = vrot.slane %v701, 2
        %v1111 = vsel %vm1041, %v1108, %v1110
        %v1112 = vrot.slane %v702, 2
        %v1113 = vrot.slane %v703, 2
        %v1114 = vsel %vm1041, %v1112, %v1113
        %v1115 = vrot.slane %v704, 2
        %v1116 = vsel %vm1041, %v1113, %v1115
        %v1117 = vrot.slane %v705, 2
        %v1118 = vrot.slane %v706, 2
        %v1119 = vsel %vm1041, %v1117, %v1118
        %v1120 = vrot.slane %v707, 2
        %v1121 = vsel %vm1041, %v1118, %v1120
        %v1122 = vrot.slane %v708, 2
        %v1123 = vrot.slane %v709, 2
        %v1124 = vsel %vm1041, %v1122, %v1123
        %v1125 = vrot.slane %v710, 2
        %v1126 = vsel %vm1041, %v1123, %v1125
        %v1127 = vrot.slane %v711, 2
        %v1128 = vrot.slane %v712, 2
        %v1129 = vsel %vm1041, %v1127, %v1128
        %v1130 = vrot.slane %v713, 2
        %v1131 = vsel %vm1041, %v1128, %v1130
        %1168 = vst.msk [vmem:[#allocation2 + $0x8] sm:$0xff] %vm714, %v1044
        %1169 = vst.msk [vmem:[#allocation2 + $0x18] sm:$0xff] %vm714, %v1046
        %1170 = vst.msk [vmem:[#allocation2 + $0x28] sm:$0xff] %vm714, %v1049
        %1171 = vst.msk [vmem:[#allocation2 + $0x38] sm:$0xff] %vm714, %v1051
        %1172 = vst.msk [vmem:[#allocation2 + $0x48] sm:$0xff] %vm714, %v1054
        %1173 = vst.msk [vmem:[#allocation2 + $0x58] sm:$0xff] %vm714, %v1056
        %1174 = vst.msk [vmem:[#allocation2 + $0x68] sm:$0xff] %vm714, %v1059
        %1175 = vst.msk [vmem:[#allocation2 + $0x78] sm:$0xff] %vm714, %v1061
        %1176 = vst.msk [vmem:[#allocation2 + $0x88] sm:$0xff] %vm714, %v1064
        %1177 = vst.msk [vmem:[#allocation2 + $0x98] sm:$0xff] %vm714, %v1066
        %1178 = vst.msk [vmem:[#allocation2 + $0xa8] sm:$0xff] %vm714, %v1069
        %1179 = vst.msk [vmem:[#allocation2 + $0xb8] sm:$0xff] %vm714, %v1071
        %1180 = vst.msk [vmem:[#allocation2 + $0xc8] sm:$0xff] %vm714, %v1074
        %1181 = vst.msk [vmem:[#allocation2 + $0xd8] sm:$0xff] %vm714, %v1076
        %1182 = vst.msk [vmem:[#allocation2 + $0xe8] sm:$0xff] %vm714, %v1079
        %1183 = vst.msk [vmem:[#allocation2 + $0xf8] sm:$0xff] %vm714, %v1081
        %1184 = vst.msk [vmem:[#allocation2 + $0x108] sm:$0xff] %vm714, %v1084
        %1185 = vst.msk [vmem:[#allocation2 + $0x118] sm:$0xff] %vm714, %v1086
        %1186 = vst.msk [vmem:[#allocation2 + $0x128] sm:$0xff] %vm714, %v1089
        %1187 = vst.msk [vmem:[#allocation2 + $0x138] sm:$0xff] %vm714, %v1091
        %1188 = vst.msk [vmem:[#allocation2 + $0x148] sm:$0xff] %vm714, %v1094
        %1189 = vst.msk [vmem:[#allocation2 + $0x158] sm:$0xff] %vm714, %v1096
        %1190 = vst.msk [vmem:[#allocation2 + $0x168] sm:$0xff] %vm714, %v1099
        %1191 = vst.msk [vmem:[#allocation2 + $0x178] sm:$0xff] %vm714, %v1101
        %1192 = vst.msk [vmem:[#allocation2 + $0x188] sm:$0xff] %vm714, %v1104
        %1193 = vst.msk [vmem:[#allocation2 + $0x198] sm:$0xff] %vm714, %v1106
        %1194 = vst.msk [vmem:[#allocation2 + $0x1a8] sm:$0xff] %vm714, %v1109
        %1195 = vst.msk [vmem:[#allocation2 + $0x1b8] sm:$0xff] %vm714, %v1111
        %1196 = vst.msk [vmem:[#allocation2 + $0x1c8] sm:$0xff] %vm714, %v1114
        %1197 = vst.msk [vmem:[#allocation2 + $0x1d8] sm:$0xff] %vm714, %v1116
        %1198 = vst.msk [vmem:[#allocation2 + $0x1e8] sm:$0xff] %vm714, %v1119
        %1199 = vst.msk [vmem:[#allocation2 + $0x1f8] sm:$0xff] %vm714, %v1121
        %1200 = vst.msk [vmem:[#allocation2 + $0x208] sm:$0xff] %vm714, %v1124
        %1201 = vst.msk [vmem:[#allocation2 + $0x218] sm:$0xff] %vm714, %v1126
        %1202 = vst.msk [vmem:[#allocation2 + $0x228] sm:$0xff] %vm714, %v1129
        %1203 = vst.msk [vmem:[#allocation2 + $0x238] sm:$0xff] %vm714, %v1131
        %vm1204 = vcmask 516096
        %1205 = vst.msk [vmem:[#allocation2] sm:$0x1] %vm1204, 0.0
        %1206 = vst.msk [vmem:[#allocation2 + $0x20] sm:$0x1] %vm1204, 0.0
        %1207 = vst.msk [vmem:[#allocation2 + $0x40] sm:$0x1] %vm1204, 0.0
        %1208 = vst.msk [vmem:[#allocation2 + $0x60] sm:$0x1] %vm1204, 0.0
        %1209 = vst.msk [vmem:[#allocation2 + $0x80] sm:$0x1] %vm1204, 0.0
        %1210 = vst.msk [vmem:[#allocation2 + $0xa0] sm:$0x1] %vm1204, 0.0
        %1211 = vst.msk [vmem:[#allocation2 + $0xc0] sm:$0x1] %vm1204, 0.0
        %1212 = vst.msk [vmem:[#allocation2 + $0xe0] sm:$0x1] %vm1204, 0.0
        %1213 = vst.msk [vmem:[#allocation2 + $0x100] sm:$0x1] %vm1204, 0.0
        %1214 = vst.msk [vmem:[#allocation2 + $0x120] sm:$0x1] %vm1204, 0.0
        %1215 = vst.msk [vmem:[#allocation2 + $0x140] sm:$0x1] %vm1204, 0.0
        %1216 = vst.msk [vmem:[#allocation2 + $0x160] sm:$0x1] %vm1204, 0.0
        %1217 = vst.msk [vmem:[#allocation2 + $0x180] sm:$0x1] %vm1204, 0.0
        %1218 = vst.msk [vmem:[#allocation2 + $0x1a0] sm:$0x1] %vm1204, 0.0
        %1219 = vst.msk [vmem:[#allocation2 + $0x1c0] sm:$0x1] %vm1204, 0.0
        %1220 = vst.msk [vmem:[#allocation2 + $0x1e0] sm:$0x1] %vm1204, 0.0
        %1221 = vst.msk [vmem:[#allocation2 + $0x200] sm:$0x1] %vm1204, 0.0
        %1222 = vst.msk [vmem:[#allocation2 + $0x220] sm:$0x1] %vm1204, 0.0
        %1223 = vst.msk [vmem:[#allocation2 + $0x1f] sm:$0x1] %vm1204, 0.0
        %1224 = vst.msk [vmem:[#allocation2 + $0x3f] sm:$0x1] %vm1204, 0.0
        %1225 = vst.msk [vmem:[#allocation2 + $0x5f] sm:$0x1] %vm1204, 0.0
        %1226 = vst.msk [vmem:[#allocation2 + $0x7f] sm:$0x1] %vm1204, 0.0
        %1227 = vst.msk [vmem:[#allocation2 + $0x9f] sm:$0x1] %vm1204, 0.0
        %1228 = vst.msk [vmem:[#allocation2 + $0xbf] sm:$0x1] %vm1204, 0.0
        %1229 = vst.msk [vmem:[#allocation2 + $0xdf] sm:$0x1] %vm1204, 0.0
        %1230 = vst.msk [vmem:[#allocation2 + $0xff] sm:$0x1] %vm1204, 0.0
        %1231 = vst.msk [vmem:[#allocation2 + $0x11f] sm:$0x1] %vm1204, 0.0
        %1232 = vst.msk [vmem:[#allocation2 + $0x13f] sm:$0x1] %vm1204, 0.0
        %1233 = vst.msk [vmem:[#allocation2 + $0x15f] sm:$0x1] %vm1204, 0.0
        %1234 = vst.msk [vmem:[#allocation2 + $0x17f] sm:$0x1] %vm1204, 0.0
        %1235 = vst.msk [vmem:[#allocation2 + $0x19f] sm:$0x1] %vm1204, 0.0
        %1236 = vst.msk [vmem:[#allocation2 + $0x1bf] sm:$0x1] %vm1204, 0.0
        %1237 = vst.msk [vmem:[#allocation2 + $0x1df] sm:$0x1] %vm1204, 0.0
        %1238 = vst.msk [vmem:[#allocation2 + $0x1ff] sm:$0x1] %vm1204, 0.0
        %1239 = vst.msk [vmem:[#allocation2 + $0x21f] sm:$0x1] %vm1204, 0.0
        %1240 = vst.msk [vmem:[#allocation2 + $0x23f] sm:$0x1] %vm1204, 0.0
        %p1241 = scmp.eq.s32.totalorder %s24, 0
        // Predicated region
        $region41: #{_lambda_.1} parent=39 // pred_check
          %p1242 = pneg %p1241
        $region42: #{_lambda_.1} parent=39 // pred_check_branch
          %1244 = sbr.rel (%p1242) target = $region44
        $region43: #{_lambda_.1} parent=39 // pred_region
          %1245 = vst [vmem:[#allocation2] sm:$0xff] 0.0
          %1246 = vst.msk [vmem:[#allocation2 + $0x8] sm:$0xff] %vm714, 0.0
          %1247 = vst [vmem:[#allocation2 + $0x10] sm:$0xff] 0.0
          %1248 = vst.msk [vmem:[#allocation2 + $0x18] sm:$0xff] %vm714, 0.0
          %s1249 = scalar_lea.vmem [#allocation2], 544
          %1250 = vst [vmem:[%s1249] sm:$0xff] 0.0
          %1251 = vst.msk [vmem:[%s1249 + $0x8] sm:$0xff] %vm714, 0.0
          %1252 = vst [vmem:[%s1249 + $0x10] sm:$0xff] 0.0
          %1253 = vst.msk [vmem:[%s1249 + $0x18] sm:$0xff] %vm714, 0.0
        $region44: #{_lambda_.1} parent=39 // pred_fallthru
          _
        %v1254 = vld [vmem:[#allocation2] sm:$0xff]
        %v1255 = vld [vmem:[#allocation2 + $0x8] sm:$0xff]
        %v1256 = vld [vmem:[#allocation2 + $0x10] sm:$0xff]
        %v1257 = vld [vmem:[#allocation2 + $0x18] sm:$0xff]
        %v1258 = vld [vmem:[#allocation2 + $0x20] sm:$0xff]
        %v1259 = vld [vmem:[#allocation2 + $0x28] sm:$0xff]
        %v1260 = vld [vmem:[#allocation2 + $0x30] sm:$0xff]
        %v1261 = vld [vmem:[#allocation2 + $0x38] sm:$0xff]
        %v1262 = vld [vmem:[#allocation2 + $0x40] sm:$0xff]
        %v1263 = vld [vmem:[#allocation2 + $0x48] sm:$0xff]
        %v1264 = vld [vmem:[#allocation2 + $0x50] sm:$0xff]
        %v1265 = vld [vmem:[#allocation2 + $0x58] sm:$0xff]
        %v1266 = vld [vmem:[#allocation2 + $0x60] sm:$0xff]
        %v1267 = vld [vmem:[#allocation2 + $0x68] sm:$0xff]
        %v1268 = vld [vmem:[#allocation2 + $0x70] sm:$0xff]
        %v1269 = vld [vmem:[#allocation2 + $0x78] sm:$0xff]
        %v1270 = vld [vmem:[#allocation2 + $0x80] sm:$0xff]
        %v1271 = vld [vmem:[#allocation2 + $0x88] sm:$0xff]
        %v1272 = vld [vmem:[#allocation2 + $0x90] sm:$0xff]
        %v1273 = vld [vmem:[#allocation2 + $0x98] sm:$0xff]
        %v1274 = vld [vmem:[#allocation2 + $0xa0] sm:$0xff]
        %v1275 = vld [vmem:[#allocation2 + $0xa8] sm:$0xff]
        %v1276 = vld [vmem:[#allocation2 + $0xb0] sm:$0xff]
        %v1277 = vld [vmem:[#allocation2 + $0xb8] sm:$0xff]
        %v1278 = vld [vmem:[#allocation2 + $0xc0] sm:$0xff]
        %v1279 = vld [vmem:[#allocation2 + $0xc8] sm:$0xff]
        %v1280 = vld [vmem:[#allocation2 + $0xd0] sm:$0xff]
        %v1281 = vld [vmem:[#allocation2 + $0xd8] sm:$0xff]
        %v1282 = vld [vmem:[#allocation2 + $0xe0] sm:$0xff]
        %v1283 = vld [vmem:[#allocation2 + $0xe8] sm:$0xff]
        %v1284 = vld [vmem:[#allocation2 + $0xf0] sm:$0xff]
        %v1285 = vld [vmem:[#allocation2 + $0xf8] sm:$0xff]
        %v1286 = vld [vmem:[#allocation2 + $0x100] sm:$0xff]
        %v1287 = vld [vmem:[#allocation2 + $0x108] sm:$0xff]
        %v1288 = vld [vmem:[#allocation2 + $0x110] sm:$0xff]
        %v1289 = vld [vmem:[#allocation2 + $0x118] sm:$0xff]
        %v1290 = vld [vmem:[#allocation2 + $0x120] sm:$0xff]
        %v1291 = vld [vmem:[#allocation2 + $0x128] sm:$0xff]
        %v1292 = vld [vmem:[#allocation2 + $0x130] sm:$0xff]
        %v1293 = vld [vmem:[#allocation2 + $0x138] sm:$0xff]
        %v1294 = vld [vmem:[#allocation2 + $0x140] sm:$0xff]
        %v1295 = vld [vmem:[#allocation2 + $0x148] sm:$0xff]
        %v1296 = vld [vmem:[#allocation2 + $0x150] sm:$0xff]
        %v1297 = vld [vmem:[#allocation2 + $0x158] sm:$0xff]
        %v1298 = vld [vmem:[#allocation2 + $0x160] sm:$0xff]
        %v1299 = vld [vmem:[#allocation2 + $0x168] sm:$0xff]
        %v1300 = vld [vmem:[#allocation2 + $0x170] sm:$0xff]
        %v1301 = vld [vmem:[#allocation2 + $0x178] sm:$0xff]
        %v1302 = vld [vmem:[#allocation2 + $0x180] sm:$0xff]
        %v1303 = vld [vmem:[#allocation2 + $0x188] sm:$0xff]
        %v1304 = vld [vmem:[#allocation2 + $0x190] sm:$0xff]
        %v1305 = vld [vmem:[#allocation2 + $0x198] sm:$0xff]
        %v1306 = vld [vmem:[#allocation2 + $0x1a0] sm:$0xff]
        %v1307 = vld [vmem:[#allocation2 + $0x1a8] sm:$0xff]
        %v1308 = vld [vmem:[#allocation2 + $0x1b0] sm:$0xff]
        %v1309 = vld [vmem:[#allocation2 + $0x1b8] sm:$0xff]
        %v1310 = vld [vmem:[#allocation2 + $0x1c0] sm:$0xff]
        %v1311 = vld [vmem:[#allocation2 + $0x1c8] sm:$0xff]
        %v1312 = vld [vmem:[#allocation2 + $0x1d0] sm:$0xff]
        %v1313 = vld [vmem:[#allocation2 + $0x1d8] sm:$0xff]
        %v1314 = vld [vmem:[#allocation2 + $0x1e0] sm:$0xff]
        %v1315 = vld [vmem:[#allocation2 + $0x1e8] sm:$0xff]
        %v1316 = vld [vmem:[#allocation2 + $0x1f0] sm:$0xff]
        %v1317 = vld [vmem:[#allocation2 + $0x1f8] sm:$0xff]
        %v1318 = vld [vmem:[#allocation2 + $0x200] sm:$0xff]
        %v1319 = vld [vmem:[#allocation2 + $0x208] sm:$0xff]
        %v1320 = vld [vmem:[#allocation2 + $0x210] sm:$0xff]
        %v1321 = vld [vmem:[#allocation2 + $0x218] sm:$0xff]
        %v1322 = vld [vmem:[#allocation2 + $0x220] sm:$0xff]
        %v1323 = vld [vmem:[#allocation2 + $0x228] sm:$0xff]
        %v1324 = vld [vmem:[#allocation2 + $0x230] sm:$0xff]
        %v1325 = vld [vmem:[#allocation2 + $0x238] sm:$0xff]
        %v1326 = vld [vmem:[%s3] sm:$0xff]
        %v1327 = vld [vmem:[%s3 + $0x8] sm:$0xff]
        %v1328 = vld [vmem:[%s3 + $0x10] sm:$0xff]
        %v1329 = vld [vmem:[%s3 + $0x18] sm:$0xff]
        %v1330 = vld [vmem:[%s3 + $0x20] sm:$0xff]
        %v1331 = vld [vmem:[%s3 + $0x28] sm:$0xff]
        %v1332 = vld [vmem:[%s3 + $0x30] sm:$0xff]
        %v1333 = vld [vmem:[%s3 + $0x38] sm:$0xff]
        %v1334 = vld [vmem:[%s3 + $0x40] sm:$0xff]
        %v1335 = vld [vmem:[%s3 + $0x48] sm:$0xff]
        %v1336 = vld [vmem:[%s3 + $0x50] sm:$0xff]
        %v1337 = vld [vmem:[%s3 + $0x58] sm:$0xff]
        %v1338 = vld [vmem:[%s3 + $0x60] sm:$0xff]
        %v1339 = vld [vmem:[%s3 + $0x68] sm:$0xff]
        %v1340 = vld [vmem:[%s3 + $0x70] sm:$0xff]
        %v1341 = vld [vmem:[%s3 + $0x78] sm:$0xff]
        %v1342 = vld [vmem:[%s3 + $0x80] sm:$0xff]
        %v1343 = vld [vmem:[%s3 + $0x88] sm:$0xff]
        %v1344 = vld [vmem:[%s3 + $0x90] sm:$0xff]
        %v1345 = vld [vmem:[%s3 + $0x98] sm:$0xff]
        %v1346 = vld [vmem:[%s3 + $0xa0] sm:$0xff]
        %v1347 = vld [vmem:[%s3 + $0xa8] sm:$0xff]
        %v1348 = vld [vmem:[%s3 + $0xb0] sm:$0xff]
        %v1349 = vld [vmem:[%s3 + $0xb8] sm:$0xff]
        %v1350 = vld [vmem:[%s3 + $0xc0] sm:$0xff]
        %v1351 = vld [vmem:[%s3 + $0xc8] sm:$0xff]
        %v1352 = vld [vmem:[%s3 + $0xd0] sm:$0xff]
        %v1353 = vld [vmem:[%s3 + $0xd8] sm:$0xff]
        %v1354 = vld [vmem:[%s3 + $0xe0] sm:$0xff]
        %v1355 = vld [vmem:[%s3 + $0xe8] sm:$0xff]
        %v1356 = vld [vmem:[%s3 + $0xf0] sm:$0xff]
        %v1357 = vld [vmem:[%s3 + $0xf8] sm:$0xff]
        %v1358 = vld [vmem:[%s3 + $0x100] sm:$0xff]
        %v1359 = vld [vmem:[%s3 + $0x108] sm:$0xff]
        %v1360 = vld [vmem:[%s3 + $0x110] sm:$0xff]
        %v1361 = vld [vmem:[%s3 + $0x118] sm:$0xff]
        %v1362 = vld [vmem:[%s3 + $0x120] sm:$0xff]
        %v1363 = vld [vmem:[%s3 + $0x128] sm:$0xff]
        %v1364 = vld [vmem:[%s3 + $0x130] sm:$0xff]
        %v1365 = vld [vmem:[%s3 + $0x138] sm:$0xff]
        %v1366 = vld [vmem:[%s3 + $0x140] sm:$0xff]
        %v1367 = vld [vmem:[%s3 + $0x148] sm:$0xff]
        %v1368 = vld [vmem:[%s3 + $0x150] sm:$0xff]
        %v1369 = vld [vmem:[%s3 + $0x158] sm:$0xff]
        %v1370 = vld [vmem:[%s3 + $0x160] sm:$0xff]
        %v1371 = vld [vmem:[%s3 + $0x168] sm:$0xff]
        %v1372 = vld [vmem:[%s3 + $0x170] sm:$0xff]
        %v1373 = vld [vmem:[%s3 + $0x178] sm:$0xff]
        %v1375 = vsel %vm714, %v1255, 0
        %v1378 = vsel %vm714, %v1257, 0
        %v1381 = vsel %vm714, %v1259, 0
        %v1384 = vsel %vm714, %v1261, 0
        %v1387 = vsel %vm714, %v1263, 0
        %v1390 = vsel %vm714, %v1265, 0
        %v1393 = vsel %vm714, %v1267, 0
        %v1396 = vsel %vm714, %v1269, 0
        %v1399 = vsel %vm714, %v1271, 0
        %v1402 = vsel %vm714, %v1273, 0
        %v1405 = vsel %vm714, %v1275, 0
        %v1408 = vsel %vm714, %v1277, 0
        %v1411 = vsel %vm714, %v1279, 0
        %v1414 = vsel %vm714, %v1281, 0
        %v1417 = vsel %vm714, %v1283, 0
        %v1420 = vsel %vm714, %v1285, 0
        %v1423 = vsel %vm714, %v1287, 0
        %v1426 = vsel %vm714, %v1289, 0
        %v1429 = vsel %vm714, %v1291, 0
        %v1432 = vsel %vm714, %v1293, 0
        %v1435 = vsel %vm714, %v1295, 0
        %v1438 = vsel %vm714, %v1297, 0
        %v1441 = vsel %vm714, %v1299, 0
        %v1444 = vsel %vm714, %v1301, 0
        %v1447 = vsel %vm714, %v1303, 0
        %v1450 = vsel %vm714, %v1305, 0
        %v1453 = vsel %vm714, %v1307, 0
        %v1456 = vsel %vm714, %v1309, 0
        %v1459 = vsel %vm714, %v1311, 0
        %v1462 = vsel %vm714, %v1313, 0
        %v1465 = vsel %vm714, %v1315, 0
        %v1468 = vsel %vm714, %v1317, 0
        %v1471 = vsel %vm714, %v1319, 0
        %v1474 = vsel %vm714, %v1321, 0
        %v1477 = vsel %vm714, %v1323, 0
        %v1480 = vsel %vm714, %v1325, 0
        %1482 = vmatpush.msra.mxu0 %v1356
        %1483 = vmatpush.msra.mxu0 %v1354
        %1484 = vmatpush.msra.mxu0 %v1352
        %1485 = vmatpush.msra.mxu0 %v1350
        %1486 = vmatpush.msra.mxu0 %v1348
        %1487 = vmatpush.msra.mxu0 %v1346
        %1488 = vmatpush.msra.mxu0 %v1344
        %1489 = vmatpush.msra.mxu0 %v1342
        %1490 = vmatpush.msra.mxu0 %v1340
        %1491 = vmatpush.msra.mxu0 %v1338
        %1492 = vmatpush.msra.mxu0 %v1336
        %1493 = vmatpush.msra.mxu0 %v1334
        %1494 = vmatpush.msra.mxu0 %v1332
        %1495 = vmatpush.msra.mxu0 %v1330
        %1496 = vmatpush.msra.mxu0 %v1328
        %1497 = vmatpush.msra.mxu0 %v1326
        %1498 = vmatmul.f32.gmra.mxu0 %v1254
        %v1499 = vpop.f32.mrf.mxu0
        %v1500 = vadd.f32 0.0, %v1499
        %1501 = vmatmul.f32.gmra.mxu0 %v1256
        %v1502 = vpop.f32.mrf.mxu0
        %v1503 = vadd.f32 0.0, %v1502
        %1504 = vmatmul.f32.gmra.mxu0 %v1258
        %v1505 = vpop.f32.mrf.mxu0
        %v1506 = vadd.f32 0.0, %v1505
        %1507 = vmatmul.f32.gmra.mxu0 %v1260
        %v1508 = vpop.f32.mrf.mxu0
        %v1509 = vadd.f32 0.0, %v1508
        %1510 = vmatmul.f32.gmra.mxu0 %v1262
        %v1511 = vpop.f32.mrf.mxu0
        %v1512 = vadd.f32 0.0, %v1511
        %1513 = vmatmul.f32.gmra.mxu0 %v1264
        %v1514 = vpop.f32.mrf.mxu0
        %v1515 = vadd.f32 0.0, %v1514
        %1516 = vmatmul.f32.gmra.mxu0 %v1266
        %v1517 = vpop.f32.mrf.mxu0
        %v1518 = vadd.f32 0.0, %v1517
        %1519 = vmatmul.f32.gmra.mxu0 %v1268
        %v1520 = vpop.f32.mrf.mxu0
        %v1521 = vadd.f32 0.0, %v1520
        %1522 = vmatmul.f32.gmra.mxu0 %v1270
        %v1523 = vpop.f32.mrf.mxu0
        %v1524 = vadd.f32 0.0, %v1523
        %1525 = vmatmul.f32.gmra.mxu0 %v1272
        %v1526 = vpop.f32.mrf.mxu0
        %v1527 = vadd.f32 0.0, %v1526
        %1528 = vmatmul.f32.gmra.mxu0 %v1274
        %v1529 = vpop.f32.mrf.mxu0
        %v1530 = vadd.f32 0.0, %v1529
        %1531 = vmatmul.f32.gmra.mxu0 %v1276
        %v1532 = vpop.f32.mrf.mxu0
        %v1533 = vadd.f32 0.0, %v1532
        %1534 = vmatmul.f32.gmra.mxu0 %v1278
        %v1535 = vpop.f32.mrf.mxu0
        %v1536 = vadd.f32 0.0, %v1535
        %1537 = vmatmul.f32.gmra.mxu0 %v1280
        %v1538 = vpop.f32.mrf.mxu0
        %v1539 = vadd.f32 0.0, %v1538
        %1540 = vmatmul.f32.gmra.mxu0 %v1282
        %v1541 = vpop.f32.mrf.mxu0
        %v1542 = vadd.f32 0.0, %v1541
        %1543 = vmatmul.f32.gmra.mxu0 %v1284
        %v1544 = vpop.f32.mrf.mxu0
        %v1545 = vadd.f32 0.0, %v1544
        %1546 = vmatmul.f32.gmra.mxu0 %v1286
        %v1547 = vpop.f32.mrf.mxu0
        %v1548 = vadd.f32 0.0, %v1547
        %1549 = vmatmul.f32.gmra.mxu0 %v1288
        %v1550 = vpop.f32.mrf.mxu0
        %v1551 = vadd.f32 0.0, %v1550
        %1552 = vmatmul.f32.gmra.mxu0 %v1290
        %v1553 = vpop.f32.mrf.mxu0
        %v1554 = vadd.f32 0.0, %v1553
        %1555 = vmatmul.f32.gmra.mxu0 %v1292
        %v1556 = vpop.f32.mrf.mxu0
        %v1557 = vadd.f32 0.0, %v1556
        %1558 = vmatmul.f32.gmra.mxu0 %v1294
        %v1559 = vpop.f32.mrf.mxu0
        %v1560 = vadd.f32 0.0, %v1559
        %1561 = vmatmul.f32.gmra.mxu0 %v1296
        %v1562 = vpop.f32.mrf.mxu0
        %v1563 = vadd.f32 0.0, %v1562
        %1564 = vmatmul.f32.gmra.mxu0 %v1298
        %v1565 = vpop.f32.mrf.mxu0
        %v1566 = vadd.f32 0.0, %v1565
        %1567 = vmatmul.f32.gmra.mxu0 %v1300
        %v1568 = vpop.f32.mrf.mxu0
        %v1569 = vadd.f32 0.0, %v1568
        %1570 = vmatmul.f32.gmra.mxu0 %v1302
        %v1571 = vpop.f32.mrf.mxu0
        %v1572 = vadd.f32 0.0, %v1571
        %1573 = vmatmul.f32.gmra.mxu0 %v1304
        %v1574 = vpop.f32.mrf.mxu0
        %v1575 = vadd.f32 0.0, %v1574
        %1576 = vmatmul.f32.gmra.mxu0 %v1306
        %v1577 = vpop.f32.mrf.mxu0
        %v1578 = vadd.f32 0.0, %v1577
        %1579 = vmatmul.f32.gmra.mxu0 %v1308
        %v1580 = vpop.f32.mrf.mxu0
        %v1581 = vadd.f32 0.0, %v1580
        %1582 = vmatmul.f32.gmra.mxu0 %v1310
        %v1583 = vpop.f32.mrf.mxu0
        %v1584 = vadd.f32 0.0, %v1583
        %1585 = vmatmul.f32.gmra.mxu0 %v1312
        %v1586 = vpop.f32.mrf.mxu0
        %v1587 = vadd.f32 0.0, %v1586
        %1588 = vmatmul.f32.gmra.mxu0 %v1314
        %v1589 = vpop.f32.mrf.mxu0
        %v1590 = vadd.f32 0.0, %v1589
        %1591 = vmatmul.f32.gmra.mxu0 %v1316
        %v1592 = vpop.f32.mrf.mxu0
        %v1593 = vadd.f32 0.0, %v1592
        %1594 = vmatmul.f32.gmra.mxu0 %v1318
        %v1595 = vpop.f32.mrf.mxu0
        %v1596 = vadd.f32 0.0, %v1595
        %1597 = vmatmul.f32.gmra.mxu0 %v1320
        %v1598 = vpop.f32.mrf.mxu0
        %v1599 = vadd.f32 0.0, %v1598
        %1600 = vmatmul.f32.gmra.mxu0 %v1322
        %v1601 = vpop.f32.mrf.mxu0
        %1602 = vmatmul.f32.gmra.mxu0 %v1324
        %v1603 = vpop.f32.mrf.mxu0
        %1604 = vdwg.mxu0
        %1605 = vmatpush.msra.mxu0 0.0
        %1606 = vmatpush.msra.mxu0 0.0
        %1607 = vmatpush.msra.mxu0 0.0
        %1608 = vmatpush.msra.mxu0 0.0
        %1609 = vmatpush.msra.mxu0 0.0
        %1610 = vmatpush.msra.mxu0 0.0
        %1611 = vmatpush.msra.mxu0 0.0
        %1612 = vmatpush.msra.mxu0 0.0
        %1613 = vmatpush.msra.mxu0 %v1372
        %1614 = vmatpush.msra.mxu0 %v1370
        %1615 = vmatpush.msra.mxu0 %v1368
        %1616 = vmatpush.msra.mxu0 %v1366
        %1617 = vmatpush.msra.mxu0 %v1364
        %1618 = vmatpush.msra.mxu0 %v1362
        %1619 = vmatpush.msra.mxu0 %v1360
        %1620 = vmatpush.msra.mxu0 %v1358
        %1621 = vmatmul.f32.gmra.mxu0 %v1375
        %v1622 = vpop.f32.mrf.mxu0
        %v1623 = vadd.f32 %v1500, %v1622
        %1624 = vmatmul.f32.gmra.mxu0 %v1378
        %v1625 = vpop.f32.mrf.mxu0
        %v1626 = vadd.f32 %v1503, %v1625
        %1627 = vmatmul.f32.gmra.mxu0 %v1381
        %v1628 = vpop.f32.mrf.mxu0
        %v1629 = vadd.f32 %v1506, %v1628
        %1630 = vmatmul.f32.gmra.mxu0 %v1384
        %v1631 = vpop.f32.mrf.mxu0
        %v1632 = vadd.f32 %v1509, %v1631
        %1633 = vmatmul.f32.gmra.mxu0 %v1387
        %v1634 = vpop.f32.mrf.mxu0
        %v1635 = vadd.f32 %v1512, %v1634
        %1636 = vmatmul.f32.gmra.mxu0 %v1390
        %v1637 = vpop.f32.mrf.mxu0
        %v1638 = vadd.f32 %v1515, %v1637
        %1639 = vmatmul.f32.gmra.mxu0 %v1393
        %v1640 = vpop.f32.mrf.mxu0
        %v1641 = vadd.f32 %v1518, %v1640
        %1642 = vmatmul.f32.gmra.mxu0 %v1396
        %v1643 = vpop.f32.mrf.mxu0
        %v1644 = vadd.f32 %v1521, %v1643
        %1645 = vmatmul.f32.gmra.mxu0 %v1399
        %v1646 = vpop.f32.mrf.mxu0
        %v1647 = vadd.f32 %v1524, %v1646
        %1648 = vmatmul.f32.gmra.mxu0 %v1402
        %v1649 = vpop.f32.mrf.mxu0
        %v1650 = vadd.f32 %v1527, %v1649
        %1651 = vmatmul.f32.gmra.mxu0 %v1405
        %v1652 = vpop.f32.mrf.mxu0
        %v1653 = vadd.f32 %v1530, %v1652
        %1654 = vmatmul.f32.gmra.mxu0 %v1408
        %v1655 = vpop.f32.mrf.mxu0
        %v1656 = vadd.f32 %v1533, %v1655
        %1657 = vmatmul.f32.gmra.mxu0 %v1411
        %v1658 = vpop.f32.mrf.mxu0
        %v1659 = vadd.f32 %v1536, %v1658
        %1660 = vmatmul.f32.gmra.mxu0 %v1414
        %v1661 = vpop.f32.mrf.mxu0
        %v1662 = vadd.f32 %v1539, %v1661
        %1663 = vmatmul.f32.gmra.mxu0 %v1417
        %v1664 = vpop.f32.mrf.mxu0
        %v1665 = vadd.f32 %v1542, %v1664
        %1666 = vmatmul.f32.gmra.mxu0 %v1420
        %v1667 = vpop.f32.mrf.mxu0
        %v1668 = vadd.f32 %v1545, %v1667
        %1669 = vmatmul.f32.gmra.mxu0 %v1423
        %v1670 = vpop.f32.mrf.mxu0
        %v1671 = vadd.f32 %v1548, %v1670
        %1672 = vmatmul.f32.gmra.mxu0 %v1426
        %v1673 = vpop.f32.mrf.mxu0
        %v1674 = vadd.f32 %v1551, %v1673
        %1675 = vmatmul.f32.gmra.mxu0 %v1429
        %v1676 = vpop.f32.mrf.mxu0
        %v1677 = vadd.f32 %v1554, %v1676
        %1678 = vmatmul.f32.gmra.mxu0 %v1432
        %v1679 = vpop.f32.mrf.mxu0
        %v1680 = vadd.f32 %v1557, %v1679
        %1681 = vmatmul.f32.gmra.mxu0 %v1435
        %v1682 = vpop.f32.mrf.mxu0
        %v1683 = vadd.f32 %v1560, %v1682
        %1684 = vmatmul.f32.gmra.mxu0 %v1438
        %v1685 = vpop.f32.mrf.mxu0
        %v1686 = vadd.f32 %v1563, %v1685
        %1687 = vmatmul.f32.gmra.mxu0 %v1441
        %v1688 = vpop.f32.mrf.mxu0
        %v1689 = vadd.f32 %v1566, %v1688
        %1690 = vmatmul.f32.gmra.mxu0 %v1444
        %v1691 = vpop.f32.mrf.mxu0
        %v1692 = vadd.f32 %v1569, %v1691
        %1693 = vmatmul.f32.gmra.mxu0 %v1447
        %v1694 = vpop.f32.mrf.mxu0
        %v1695 = vadd.f32 %v1572, %v1694
        %1696 = vmatmul.f32.gmra.mxu0 %v1450
        %v1697 = vpop.f32.mrf.mxu0
        %v1698 = vadd.f32 %v1575, %v1697
        %1699 = vmatmul.f32.gmra.mxu0 %v1453
        %v1700 = vpop.f32.mrf.mxu0
        %v1701 = vadd.f32 %v1578, %v1700
        %1702 = vmatmul.f32.gmra.mxu0 %v1456
        %v1703 = vpop.f32.mrf.mxu0
        %v1704 = vadd.f32 %v1581, %v1703
        %1705 = vmatmul.f32.gmra.mxu0 %v1459
        %v1706 = vpop.f32.mrf.mxu0
        %v1707 = vadd.f32 %v1584, %v1706
        %1708 = vmatmul.f32.gmra.mxu0 %v1462
        %v1709 = vpop.f32.mrf.mxu0
        %v1710 = vadd.f32 %v1587, %v1709
        %1711 = vmatmul.f32.gmra.mxu0 %v1465
        %v1712 = vpop.f32.mrf.mxu0
        %v1713 = vadd.f32 %v1590, %v1712
        %1714 = vmatmul.f32.gmra.mxu0 %v1468
        %v1715 = vpop.f32.mrf.mxu0
        %v1716 = vadd.f32 %v1593, %v1715
        %1717 = vmatmul.f32.gmra.mxu0 %v1471
        %v1718 = vpop.f32.mrf.mxu0
        %v1719 = vadd.f32 %v1596, %v1718
        %1720 = vmatmul.f32.gmra.mxu0 %v1474
        %v1721 = vpop.f32.mrf.mxu0
        %v1722 = vadd.f32 %v1599, %v1721
        %1723 = vmatmul.f32.gmra.mxu0 %v1477
        %v1724 = vpop.f32.mrf.mxu0
        %1725 = vmatmul.f32.gmra.mxu0 %v1480
        %v1726 = vpop.f32.mrf.mxu0
        %1727 = vdwg.mxu0
        %1728 = vmatpush.msra.mxu0 %v1357
        %1729 = vmatpush.msra.mxu0 %v1355
        %1730 = vmatpush.msra.mxu0 %v1353
        %1731 = vmatpush.msra.mxu0 %v1351
        %1732 = vmatpush.msra.mxu0 %v1349
        %1733 = vmatpush.msra.mxu0 %v1347
        %1734 = vmatpush.msra.mxu0 %v1345
        %1735 = vmatpush.msra.mxu0 %v1343
        %1736 = vmatpush.msra.mxu0 %v1341
        %1737 = vmatpush.msra.mxu0 %v1339
        %1738 = vmatpush.msra.mxu0 %v1337
        %1739 = vmatpush.msra.mxu0 %v1335
        %1740 = vmatpush.msra.mxu0 %v1333
        %1741 = vmatpush.msra.mxu0 %v1331
        %1742 = vmatpush.msra.mxu0 %v1329
        %1743 = vmatpush.msra.mxu0 %v1327
        %1744 = vmatmul.f32.gmra.mxu0 %v1254
        %v1745 = vpop.f32.mrf.mxu0
        %1746 = vmatmul.f32.gmra.mxu0 %v1256
        %v1747 = vpop.f32.mrf.mxu0
        %1748 = vmatmul.f32.gmra.mxu0 %v1258
        %v1749 = vpop.f32.mrf.mxu0
        %1750 = vmatmul.f32.gmra.mxu0 %v1260
        %v1751 = vpop.f32.mrf.mxu0
        %1752 = vmatmul.f32.gmra.mxu0 %v1262
        %v1753 = vpop.f32.mrf.mxu0
        %v1754 = vadd.f32 0.0, %v1753
        %1755 = vmatmul.f32.gmra.mxu0 %v1264
        %v1756 = vpop.f32.mrf.mxu0
        %v1757 = vadd.f32 0.0, %v1756
        %1758 = vmatmul.f32.gmra.mxu0 %v1266
        %v1759 = vpop.f32.mrf.mxu0
        %v1760 = vadd.f32 0.0, %v1759
        %1761 = vmatmul.f32.gmra.mxu0 %v1268
        %v1762 = vpop.f32.mrf.mxu0
        %v1763 = vadd.f32 0.0, %v1762
        %1764 = vmatmul.f32.gmra.mxu0 %v1270
        %v1765 = vpop.f32.mrf.mxu0
        %v1766 = vadd.f32 0.0, %v1765
        %1767 = vmatmul.f32.gmra.mxu0 %v1272
        %v1768 = vpop.f32.mrf.mxu0
        %v1769 = vadd.f32 0.0, %v1768
        %1770 = vmatmul.f32.gmra.mxu0 %v1274
        %v1771 = vpop.f32.mrf.mxu0
        %v1772 = vadd.f32 0.0, %v1771
        %1773 = vmatmul.f32.gmra.mxu0 %v1276
        %v1774 = vpop.f32.mrf.mxu0
        %v1775 = vadd.f32 0.0, %v1774
        %1776 = vmatmul.f32.gmra.mxu0 %v1278
        %v1777 = vpop.f32.mrf.mxu0
        %v1778 = vadd.f32 0.0, %v1777
        %1779 = vmatmul.f32.gmra.mxu0 %v1280
        %v1780 = vpop.f32.mrf.mxu0
        %v1781 = vadd.f32 0.0, %v1780
        %1782 = vmatmul.f32.gmra.mxu0 %v1282
        %v1783 = vpop.f32.mrf.mxu0
        %v1784 = vadd.f32 0.0, %v1783
        %1785 = vmatmul.f32.gmra.mxu0 %v1284
        %v1786 = vpop.f32.mrf.mxu0
        %v1787 = vadd.f32 0.0, %v1786
        %1788 = vmatmul.f32.gmra.mxu0 %v1286
        %v1789 = vpop.f32.mrf.mxu0
        %v1790 = vadd.f32 0.0, %v1789
        %1791 = vmatmul.f32.gmra.mxu0 %v1288
        %v1792 = vpop.f32.mrf.mxu0
        %v1793 = vadd.f32 0.0, %v1792
        %1794 = vmatmul.f32.gmra.mxu0 %v1290
        %v1795 = vpop.f32.mrf.mxu0
        %v1796 = vadd.f32 0.0, %v1795
        %1797 = vmatmul.f32.gmra.mxu0 %v1292
        %v1798 = vpop.f32.mrf.mxu0
        %v1799 = vadd.f32 0.0, %v1798
        %1800 = vmatmul.f32.gmra.mxu0 %v1294
        %v1801 = vpop.f32.mrf.mxu0
        %v1802 = vadd.f32 0.0, %v1801
        %1803 = vmatmul.f32.gmra.mxu0 %v1296
        %v1804 = vpop.f32.mrf.mxu0
        %v1805 = vadd.f32 0.0, %v1804
        %1806 = vmatmul.f32.gmra.mxu0 %v1298
        %v1807 = vpop.f32.mrf.mxu0
        %v1808 = vadd.f32 0.0, %v1807
        %1809 = vmatmul.f32.gmra.mxu0 %v1300
        %v1810 = vpop.f32.mrf.mxu0
        %v1811 = vadd.f32 0.0, %v1810
        %1812 = vmatmul.f32.gmra.mxu0 %v1302
        %v1813 = vpop.f32.mrf.mxu0
        %v1814 = vadd.f32 0.0, %v1813
        %1815 = vmatmul.f32.gmra.mxu0 %v1304
        %v1816 = vpop.f32.mrf.mxu0
        %v1817 = vadd.f32 0.0, %v1816
        %1818 = vmatmul.f32.gmra.mxu0 %v1306
        %v1819 = vpop.f32.mrf.mxu0
        %v1820 = vadd.f32 0.0, %v1819
        %1821 = vmatmul.f32.gmra.mxu0 %v1308
        %v1822 = vpop.f32.mrf.mxu0
        %v1823 = vadd.f32 0.0, %v1822
        %1824 = vmatmul.f32.gmra.mxu0 %v1310
        %v1825 = vpop.f32.mrf.mxu0
        %v1826 = vadd.f32 0.0, %v1825
        %1827 = vmatmul.f32.gmra.mxu0 %v1312
        %v1828 = vpop.f32.mrf.mxu0
        %v1829 = vadd.f32 0.0, %v1828
        %1830 = vmatmul.f32.gmra.mxu0 %v1314
        %v1831 = vpop.f32.mrf.mxu0
        %v1832 = vadd.f32 0.0, %v1831
        %1833 = vmatmul.f32.gmra.mxu0 %v1316
        %v1834 = vpop.f32.mrf.mxu0
        %v1835 = vadd.f32 0.0, %v1834
        %1836 = vmatmul.f32.gmra.mxu0 %v1318
        %v1837 = vpop.f32.mrf.mxu0
        %v1838 = vadd.f32 0.0, %v1837
        %1839 = vmatmul.f32.gmra.mxu0 %v1320
        %v1840 = vpop.f32.mrf.mxu0
        %v1841 = vadd.f32 0.0, %v1840
        %1842 = vmatmul.f32.gmra.mxu0 %v1322
        %v1843 = vpop.f32.mrf.mxu0
        %v1844 = vadd.f32 0.0, %v1843
        %1845 = vmatmul.f32.gmra.mxu0 %v1324
        %v1846 = vpop.f32.mrf.mxu0
        %v1847 = vadd.f32 0.0, %v1846
        %1848 = vdwg.mxu0
        %1849 = vmatpush.msra.mxu0 0.0
        %1850 = vmatpush.msra.mxu0 0.0
        %1851 = vmatpush.msra.mxu0 0.0
        %1852 = vmatpush.msra.mxu0 0.0
        %1853 = vmatpush.msra.mxu0 0.0
        %1854 = vmatpush.msra.mxu0 0.0
        %1855 = vmatpush.msra.mxu0 0.0
        %1856 = vmatpush.msra.mxu0 0.0
        %1857 = vmatpush.msra.mxu0 %v1373
        %1858 = vmatpush.msra.mxu0 %v1371
        %1859 = vmatpush.msra.mxu0 %v1369
        %1860 = vmatpush.msra.mxu0 %v1367
        %1861 = vmatpush.msra.mxu0 %v1365
        %1862 = vmatpush.msra.mxu0 %v1363
        %1863 = vmatpush.msra.mxu0 %v1361
        %1864 = vmatpush.msra.mxu0 %v1359
        %1865 = vmatmul.f32.gmra.mxu0 %v1375
        %v1866 = vpop.f32.mrf.mxu0
        %1867 = vmatmul.f32.gmra.mxu0 %v1378
        %v1868 = vpop.f32.mrf.mxu0
        %1869 = vmatmul.f32.gmra.mxu0 %v1381
        %v1870 = vpop.f32.mrf.mxu0
        %1871 = vmatmul.f32.gmra.mxu0 %v1384
        %v1872 = vpop.f32.mrf.mxu0
        %1873 = vmatmul.f32.gmra.mxu0 %v1387
        %v1874 = vpop.f32.mrf.mxu0
        %v1875 = vadd.f32 %v1754, %v1874
        %1876 = vmatmul.f32.gmra.mxu0 %v1390
        %v1877 = vpop.f32.mrf.mxu0
        %v1878 = vadd.f32 %v1757, %v1877
        %1879 = vmatmul.f32.gmra.mxu0 %v1393
        %v1880 = vpop.f32.mrf.mxu0
        %v1881 = vadd.f32 %v1760, %v1880
        %1882 = vmatmul.f32.gmra.mxu0 %v1396
        %v1883 = vpop.f32.mrf.mxu0
        %v1884 = vadd.f32 %v1763, %v1883
        %1885 = vmatmul.f32.gmra.mxu0 %v1399
        %v1886 = vpop.f32.mrf.mxu0
        %v1887 = vadd.f32 %v1766, %v1886
        %1888 = vmatmul.f32.gmra.mxu0 %v1402
        %v1889 = vpop.f32.mrf.mxu0
        %v1890 = vadd.f32 %v1769, %v1889
        %1891 = vmatmul.f32.gmra.mxu0 %v1405
        %v1892 = vpop.f32.mrf.mxu0
        %v1893 = vadd.f32 %v1772, %v1892
        %1894 = vmatmul.f32.gmra.mxu0 %v1408
        %v1895 = vpop.f32.mrf.mxu0
        %v1896 = vadd.f32 %v1775, %v1895
        %1897 = vmatmul.f32.gmra.mxu0 %v1411
        %v1898 = vpop.f32.mrf.mxu0
        %v1899 = vadd.f32 %v1778, %v1898
        %1900 = vmatmul.f32.gmra.mxu0 %v1414
        %v1901 = vpop.f32.mrf.mxu0
        %v1902 = vadd.f32 %v1781, %v1901
        %1903 = vmatmul.f32.gmra.mxu0 %v1417
        %v1904 = vpop.f32.mrf.mxu0
        %v1905 = vadd.f32 %v1784, %v1904
        %1906 = vmatmul.f32.gmra.mxu0 %v1420
        %v1907 = vpop.f32.mrf.mxu0
        %v1908 = vadd.f32 %v1787, %v1907
        %1909 = vmatmul.f32.gmra.mxu0 %v1423
        %v1910 = vpop.f32.mrf.mxu0
        %v1911 = vadd.f32 %v1790, %v1910
        %1912 = vmatmul.f32.gmra.mxu0 %v1426
        %v1913 = vpop.f32.mrf.mxu0
        %v1914 = vadd.f32 %v1793, %v1913
        %1915 = vmatmul.f32.gmra.mxu0 %v1429
        %v1916 = vpop.f32.mrf.mxu0
        %v1917 = vadd.f32 %v1796, %v1916
        %1918 = vmatmul.f32.gmra.mxu0 %v1432
        %v1919 = vpop.f32.mrf.mxu0
        %v1920 = vadd.f32 %v1799, %v1919
        %1921 = vmatmul.f32.gmra.mxu0 %v1435
        %v1922 = vpop.f32.mrf.mxu0
        %v1923 = vadd.f32 %v1802, %v1922
        %1924 = vmatmul.f32.gmra.mxu0 %v1438
        %v1925 = vpop.f32.mrf.mxu0
        %v1926 = vadd.f32 %v1805, %v1925
        %1927 = vmatmul.f32.gmra.mxu0 %v1441
        %v1928 = vpop.f32.mrf.mxu0
        %v1929 = vadd.f32 %v1808, %v1928
        %1930 = vmatmul.f32.gmra.mxu0 %v1444
        %v1931 = vpop.f32.mrf.mxu0
        %v1932 = vadd.f32 %v1811, %v1931
        %1933 = vmatmul.f32.gmra.mxu0 %v1447
        %v1934 = vpop.f32.mrf.mxu0
        %v1935 = vadd.f32 %v1814, %v1934
        %1936 = vmatmul.f32.gmra.mxu0 %v1450
        %v1937 = vpop.f32.mrf.mxu0
        %v1938 = vadd.f32 %v1817, %v1937
        %1939 = vmatmul.f32.gmra.mxu0 %v1453
        %v1940 = vpop.f32.mrf.mxu0
        %v1941 = vadd.f32 %v1820, %v1940
        %1942 = vmatmul.f32.gmra.mxu0 %v1456
        %v1943 = vpop.f32.mrf.mxu0
        %v1944 = vadd.f32 %v1823, %v1943
        %1945 = vmatmul.f32.gmra.mxu0 %v1459
        %v1946 = vpop.f32.mrf.mxu0
        %v1947 = vadd.f32 %v1826, %v1946
        %1948 = vmatmul.f32.gmra.mxu0 %v1462
        %v1949 = vpop.f32.mrf.mxu0
        %v1950 = vadd.f32 %v1829, %v1949
        %1951 = vmatmul.f32.gmra.mxu0 %v1465
        %v1952 = vpop.f32.mrf.mxu0
        %v1953 = vadd.f32 %v1832, %v1952
        %1954 = vmatmul.f32.gmra.mxu0 %v1468
        %v1955 = vpop.f32.mrf.mxu0
        %v1956 = vadd.f32 %v1835, %v1955
        %1957 = vmatmul.f32.gmra.mxu0 %v1471
        %v1958 = vpop.f32.mrf.mxu0
        %v1959 = vadd.f32 %v1838, %v1958
        %1960 = vmatmul.f32.gmra.mxu0 %v1474
        %v1961 = vpop.f32.mrf.mxu0
        %v1962 = vadd.f32 %v1841, %v1961
        %1963 = vmatmul.f32.gmra.mxu0 %v1477
        %v1964 = vpop.f32.mrf.mxu0
        %v1965 = vadd.f32 %v1844, %v1964
        %1966 = vmatmul.f32.gmra.mxu0 %v1480
        %v1967 = vpop.f32.mrf.mxu0
        %v1968 = vadd.f32 %v1847, %v1967
        %1969 = vdwg.mxu0
        %2002 = vrot.lane.b32.xlu0 %v1629, 64
        %v2003 = vpop.permute.xlu0 %2002
        %2004 = vrot.lane.b32.xlu0 %v1632, 64
        %v2005 = vpop.permute.xlu0 %2004
        %2006 = vrot.lane.b32.xlu0 %v1635, 64
        %v2007 = vpop.permute.xlu0 %2006
        %2008 = vrot.lane.b32.xlu0 %v1638, 64
        %v2009 = vpop.permute.xlu0 %2008
        %2010 = vrot.lane.b32.xlu0 %v1641, 64
        %v2011 = vpop.permute.xlu0 %2010
        %2012 = vrot.lane.b32.xlu0 %v1644, 64
        %v2013 = vpop.permute.xlu0 %2012
        %2014 = vrot.lane.b32.xlu0 %v1647, 64
        %v2015 = vpop.permute.xlu0 %2014
        %2016 = vrot.lane.b32.xlu0 %v1650, 64
        %v2017 = vpop.permute.xlu0 %2016
        %2018 = vrot.lane.b32.xlu0 %v1653, 64
        %v2019 = vpop.permute.xlu0 %2018
        %2020 = vrot.lane.b32.xlu0 %v1656, 64
        %v2021 = vpop.permute.xlu0 %2020
        %2022 = vrot.lane.b32.xlu0 %v1659, 64
        %v2023 = vpop.permute.xlu0 %2022
        %2024 = vrot.lane.b32.xlu0 %v1662, 64
        %v2025 = vpop.permute.xlu0 %2024
        %2026 = vrot.lane.b32.xlu0 %v1665, 64
        %v2027 = vpop.permute.xlu0 %2026
        %2028 = vrot.lane.b32.xlu0 %v1668, 64
        %v2029 = vpop.permute.xlu0 %2028
        %2030 = vrot.lane.b32.xlu0 %v1671, 64
        %v2031 = vpop.permute.xlu0 %2030
        %2032 = vrot.lane.b32.xlu0 %v1674, 64
        %v2033 = vpop.permute.xlu0 %2032
        %2034 = vrot.lane.b32.xlu0 %v1677, 64
        %v2035 = vpop.permute.xlu0 %2034
        %2036 = vrot.lane.b32.xlu0 %v1680, 64
        %v2037 = vpop.permute.xlu0 %2036
        %2038 = vrot.lane.b32.xlu0 %v1683, 64
        %v2039 = vpop.permute.xlu0 %2038
        %2040 = vrot.lane.b32.xlu0 %v1686, 64
        %v2041 = vpop.permute.xlu0 %2040
        %2042 = vrot.lane.b32.xlu0 %v1689, 64
        %v2043 = vpop.permute.xlu0 %2042
        %2044 = vrot.lane.b32.xlu0 %v1692, 64
        %v2045 = vpop.permute.xlu0 %2044
        %2046 = vrot.lane.b32.xlu0 %v1695, 64
        %v2047 = vpop.permute.xlu0 %2046
        %2048 = vrot.lane.b32.xlu0 %v1698, 64
        %v2049 = vpop.permute.xlu0 %2048
        %2050 = vrot.lane.b32.xlu0 %v1701, 64
        %v2051 = vpop.permute.xlu0 %2050
        %2052 = vrot.lane.b32.xlu0 %v1704, 64
        %v2053 = vpop.permute.xlu0 %2052
        %2054 = vrot.lane.b32.xlu0 %v1707, 64
        %v2055 = vpop.permute.xlu0 %2054
        %2056 = vrot.lane.b32.xlu0 %v1710, 64
        %v2057 = vpop.permute.xlu0 %2056
        %2058 = vrot.lane.b32.xlu0 %v1713, 64
        %v2059 = vpop.permute.xlu0 %2058
        %2060 = vrot.lane.b32.xlu0 %v1716, 64
        %v2061 = vpop.permute.xlu0 %2060
        %2062 = vrot.lane.b32.xlu0 %v1719, 64
        %v2063 = vpop.permute.xlu0 %2062
        %2064 = vrot.lane.b32.xlu0 %v1722, 64
        %v2065 = vpop.permute.xlu0 %2064
        %v2098 = vadd.f32 %v1623, %v2003
        %v2099 = vadd.f32 %v1626, %v2005
        %v2100 = vadd.f32 %v1629, %v2007
        %v2101 = vadd.f32 %v1632, %v2009
        %v2102 = vadd.f32 %v1635, %v2011
        %v2103 = vadd.f32 %v1638, %v2013
        %v2104 = vadd.f32 %v1641, %v2015
        %v2105 = vadd.f32 %v1644, %v2017
        %v2106 = vadd.f32 %v1647, %v2019
        %v2107 = vadd.f32 %v1650, %v2021
        %v2108 = vadd.f32 %v1653, %v2023
        %v2109 = vadd.f32 %v1656, %v2025
        %v2110 = vadd.f32 %v1659, %v2027
        %v2111 = vadd.f32 %v1662, %v2029
        %v2112 = vadd.f32 %v1665, %v2031
        %v2113 = vadd.f32 %v1668, %v2033
        %v2114 = vadd.f32 %v1671, %v2035
        %v2115 = vadd.f32 %v1674, %v2037
        %v2116 = vadd.f32 %v1677, %v2039
        %v2117 = vadd.f32 %v1680, %v2041
        %v2118 = vadd.f32 %v1683, %v2043
        %v2119 = vadd.f32 %v1686, %v2045
        %v2120 = vadd.f32 %v1689, %v2047
        %v2121 = vadd.f32 %v1692, %v2049
        %v2122 = vadd.f32 %v1695, %v2051
        %v2123 = vadd.f32 %v1698, %v2053
        %v2124 = vadd.f32 %v1701, %v2055
        %v2125 = vadd.f32 %v1704, %v2057
        %v2126 = vadd.f32 %v1707, %v2059
        %v2127 = vadd.f32 %v1710, %v2061
        %v2128 = vadd.f32 %v1713, %v2063
        %v2129 = vadd.f32 %v1716, %v2065
        %v2130 = vadd.f32 %v2098, %v1875
        %v2131 = vadd.f32 %v2099, %v1878
        %v2132 = vadd.f32 %v2100, %v1881
        %v2133 = vadd.f32 %v2101, %v1884
        %v2134 = vadd.f32 %v2102, %v1887
        %v2135 = vadd.f32 %v2103, %v1890
        %v2136 = vadd.f32 %v2104, %v1893
        %v2137 = vadd.f32 %v2105, %v1896
        %v2138 = vadd.f32 %v2106, %v1899
        %v2139 = vadd.f32 %v2107, %v1902
        %v2140 = vadd.f32 %v2108, %v1905
        %v2141 = vadd.f32 %v2109, %v1908
        %v2142 = vadd.f32 %v2110, %v1911
        %v2143 = vadd.f32 %v2111, %v1914
        %v2144 = vadd.f32 %v2112, %v1917
        %v2145 = vadd.f32 %v2113, %v1920
        %v2146 = vadd.f32 %v2114, %v1923
        %v2147 = vadd.f32 %v2115, %v1926
        %v2148 = vadd.f32 %v2116, %v1929
        %v2149 = vadd.f32 %v2117, %v1932
        %v2150 = vadd.f32 %v2118, %v1935
        %v2151 = vadd.f32 %v2119, %v1938
        %v2152 = vadd.f32 %v2120, %v1941
        %v2153 = vadd.f32 %v2121, %v1944
        %v2154 = vadd.f32 %v2122, %v1947
        %v2155 = vadd.f32 %v2123, %v1950
        %v2156 = vadd.f32 %v2124, %v1953
        %v2157 = vadd.f32 %v2125, %v1956
        %v2158 = vadd.f32 %v2126, %v1959
        %v2159 = vadd.f32 %v2127, %v1962
        %v2160 = vadd.f32 %v2128, %v1965
        %v2161 = vadd.f32 %v2129, %v1968
        %v2162 = vld [vmem:[%s4] sm:$0x1]
        %v2164 = vperm.slane %v2162, 0
        %v2166 = vadd.f32 %v2130, %v2164
        %v2167 = vadd.f32 %v2131, %v2164
        %v2168 = vadd.f32 %v2132, %v2164
        %v2169 = vadd.f32 %v2133, %v2164
        %v2170 = vadd.f32 %v2134, %v2164
        %v2171 = vadd.f32 %v2135, %v2164
        %v2172 = vadd.f32 %v2136, %v2164
        %v2173 = vadd.f32 %v2137, %v2164
        %v2174 = vadd.f32 %v2138, %v2164
        %v2175 = vadd.f32 %v2139, %v2164
        %v2176 = vadd.f32 %v2140, %v2164
        %v2177 = vadd.f32 %v2141, %v2164
        %v2178 = vadd.f32 %v2142, %v2164
        %v2179 = vadd.f32 %v2143, %v2164
        %v2180 = vadd.f32 %v2144, %v2164
        %v2181 = vadd.f32 %v2145, %v2164
        %v2182 = vadd.f32 %v2146, %v2164
        %v2183 = vadd.f32 %v2147, %v2164
        %v2184 = vadd.f32 %v2148, %v2164
        %v2185 = vadd.f32 %v2149, %v2164
        %v2186 = vadd.f32 %v2150, %v2164
        %v2187 = vadd.f32 %v2151, %v2164
        %v2188 = vadd.f32 %v2152, %v2164
        %v2189 = vadd.f32 %v2153, %v2164
        %v2190 = vadd.f32 %v2154, %v2164
        %v2191 = vadd.f32 %v2155, %v2164
        %v2192 = vadd.f32 %v2156, %v2164
        %v2193 = vadd.f32 %v2157, %v2164
        %v2194 = vadd.f32 %v2158, %v2164
        %v2195 = vadd.f32 %v2159, %v2164
        %v2196 = vadd.f32 %v2160, %v2164
        %v2197 = vadd.f32 %v2161, %v2164
        %v2198 = vmax.f32 %v2166, 0.0
        %v2199 = vmax.f32 %v2167, 0.0
        %v2200 = vmax.f32 %v2168, 0.0
        %v2201 = vmax.f32 %v2169, 0.0
        %v2202 = vmax.f32 %v2170, 0.0
        %v2203 = vmax.f32 %v2171, 0.0
        %v2204 = vmax.f32 %v2172, 0.0
        %v2205 = vmax.f32 %v2173, 0.0
        %v2206 = vmax.f32 %v2174, 0.0
        %v2207 = vmax.f32 %v2175, 0.0
        %v2208 = vmax.f32 %v2176, 0.0
        %v2209 = vmax.f32 %v2177, 0.0
        %v2210 = vmax.f32 %v2178, 0.0
        %v2211 = vmax.f32 %v2179, 0.0
        %v2212 = vmax.f32 %v2180, 0.0
        %v2213 = vmax.f32 %v2181, 0.0
        %v2214 = vmax.f32 %v2182, 0.0
        %v2215 = vmax.f32 %v2183, 0.0
        %v2216 = vmax.f32 %v2184, 0.0
        %v2217 = vmax.f32 %v2185, 0.0
        %v2218 = vmax.f32 %v2186, 0.0
        %v2219 = vmax.f32 %v2187, 0.0
        %v2220 = vmax.f32 %v2188, 0.0
        %v2221 = vmax.f32 %v2189, 0.0
        %v2222 = vmax.f32 %v2190, 0.0
        %v2223 = vmax.f32 %v2191, 0.0
        %v2224 = vmax.f32 %v2192, 0.0
        %v2225 = vmax.f32 %v2193, 0.0
        %v2226 = vmax.f32 %v2194, 0.0
        %v2227 = vmax.f32 %v2195, 0.0
        %v2228 = vmax.f32 %v2196, 0.0
        %v2229 = vmax.f32 %v2197, 0.0
        %2230 = vst.msk [vmem:[%s241] sm:$0xff] %vm714, %v2198
        %2231 = vst.msk [vmem:[%s241 + $0x8] sm:$0xff] %vm714, %v2199
        %2232 = vst.msk [vmem:[%s241 + $0x10] sm:$0xff] %vm714, %v2200
        %2233 = vst.msk [vmem:[%s241 + $0x18] sm:$0xff] %vm714, %v2201
        %2234 = vst.msk [vmem:[%s241 + $0x20] sm:$0xff] %vm714, %v2202
        %2235 = vst.msk [vmem:[%s241 + $0x28] sm:$0xff] %vm714, %v2203
        %2236 = vst.msk [vmem:[%s241 + $0x30] sm:$0xff] %vm714, %v2204
        %2237 = vst.msk [vmem:[%s241 + $0x38] sm:$0xff] %vm714, %v2205
        %2238 = vst.msk [vmem:[%s241 + $0x40] sm:$0xff] %vm714, %v2206
        %2239 = vst.msk [vmem:[%s241 + $0x48] sm:$0xff] %vm714, %v2207
        %2240 = vst.msk [vmem:[%s241 + $0x50] sm:$0xff] %vm714, %v2208
        %2241 = vst.msk [vmem:[%s241 + $0x58] sm:$0xff] %vm714, %v2209
        %2242 = vst.msk [vmem:[%s241 + $0x60] sm:$0xff] %vm714, %v2210
        %2243 = vst.msk [vmem:[%s241 + $0x68] sm:$0xff] %vm714, %v2211
        %2244 = vst.msk [vmem:[%s241 + $0x70] sm:$0xff] %vm714, %v2212
        %2245 = vst.msk [vmem:[%s241 + $0x78] sm:$0xff] %vm714, %v2213
        %2246 = vst.msk [vmem:[%s241 + $0x80] sm:$0xff] %vm714, %v2214
        %2247 = vst.msk [vmem:[%s241 + $0x88] sm:$0xff] %vm714, %v2215
        %2248 = vst.msk [vmem:[%s241 + $0x90] sm:$0xff] %vm714, %v2216
        %2249 = vst.msk [vmem:[%s241 + $0x98] sm:$0xff] %vm714, %v2217
        %2250 = vst.msk [vmem:[%s241 + $0xa0] sm:$0xff] %vm714, %v2218
        %2251 = vst.msk [vmem:[%s241 + $0xa8] sm:$0xff] %vm714, %v2219
        %2252 = vst.msk [vmem:[%s241 + $0xb0] sm:$0xff] %vm714, %v2220
        %2253 = vst.msk [vmem:[%s241 + $0xb8] sm:$0xff] %vm714, %v2221
        %2254 = vst.msk [vmem:[%s241 + $0xc0] sm:$0xff] %vm714, %v2222
        %2255 = vst.msk [vmem:[%s241 + $0xc8] sm:$0xff] %vm714, %v2223
        %2256 = vst.msk [vmem:[%s241 + $0xd0] sm:$0xff] %vm714, %v2224
        %2257 = vst.msk [vmem:[%s241 + $0xd8] sm:$0xff] %vm714, %v2225
        %2258 = vst.msk [vmem:[%s241 + $0xe0] sm:$0xff] %vm714, %v2226
        %2259 = vst.msk [vmem:[%s241 + $0xe8] sm:$0xff] %vm714, %v2227
        %2260 = vst.msk [vmem:[%s241 + $0xf0] sm:$0xff] %vm714, %v2228
        %2261 = vst.msk [vmem:[%s241 + $0xf8] sm:$0xff] %vm714, %v2229
        %s2262 = sand.u32 %s153, 1
        %s2263 = scalar_lea.sflag [#allocation4], %s2262
        %s2264 = sand.u32 %s153, 1
        %s2265 = smul.addr %s2264, 256
        %s2266 = scalar_lea.vmem [#allocation3], %s2265
        // Predicated region
        $region45: #{_lambda_.1} parent=39 // pred_check
          %p2267 = pneg %p163
        $region46: #{_lambda_.1} parent=39 // pred_check_branch
          %2269 = sbr.rel (%p2267) target = $region48
        $region47: #{_lambda_.1} parent=39 // pred_region
          %s2270 = smul.u32 16, %s24
          %2272 = vsyncadd %s2263, 0
          %s2273 = smul.addr %s2270, 2
          %s2274 = smul.addr %s23, 32
          %s2275 = sadd.s32 %s2273, %s2274
          %s2276 = smul.addr %s2275, 8
          %s2277 = scalar_lea.hbm %s5, %s2276
          %s2278 = sshll.u32 %s2266, 4
          %s2279 = int_to_ptr.vmem [resolvable:$true] %s2278
          %s2280 = sshll.u32 %s2277, 4
          %s2281 = int_to_ptr.hbm [resolvable:$true] %s2280
          %2286 = dma.vmem_to_hbm [thread:$0]  %s2279, 4096, %s2281, %s2263, 128, 128, 8
        $region48: #{_lambda_.1} parent=39 // pred_fallthru
          _
      $region40: #{_lambda_.1} parent=5 // pred_fallthru
        _
      %p2287 = scmp.le.s32.totalorder 2, %s14
      // Predicated region
      $region49: #{_lambda_.1} parent=5 // pred_check
        %p2288 = pneg %p2287
      $region50: #{_lambda_.1} parent=5 // pred_check_branch
        %2290 = sbr.rel (%p2288) target = $region52
      $region51: #{_lambda_.1} parent=5 // pred_region
        %s2291 = ssub.s32 %s14, 2
        // Predicated region
        $region53: #{_lambda_.1} parent=51 // pred_check
          %p2292 = pneg %p169
        $region54: #{_lambda_.1} parent=51 // pred_check_branch
          %2294 = sbr.rel (%p2292) target = $region56
        $region55: #{_lambda_.1} parent=51 // pred_region
          %s2295 = sand.u32 %s154, 1
          %s2296 = scalar_lea.sflag [#allocation4], %s2295
          %s2297 = sand.u32 %s154, 1
          %s2298 = smul.addr %s2297, 256
          %s2299 = scalar_lea.vmem [#allocation3], %s2298
          %2301 = dma.done %s2296, 4096
        $region56: #{_lambda_.1} parent=51 // pred_fallthru
          _
      $region52: #{_lambda_.1} parent=5 // pred_fallthru
        _
    $region6: #{_lambda_.1} parent=1 // loop_footer
      %s18 = sadd.s32 1, %s14
    $region7: #{_lambda_.1} parent=1 // loop_footer_branch
      %13 = sbr.rel target = $region3
    $region8: #{_lambda_.1} parent=1 // loop_exit
      _
    %2302 = vsyncpa [#allocation4], 1
    %s2303 = scalar_lea.sflag [#allocation4], 1
    %2304 = vsyncpa %s2303, 1

</llo_original>
